<compile_context>
chip_gen: v7x
topology: tpu7x:2x2x1
jax: 0.10.0
libtpu: 0.0.40
codegen_flags: <defaults>
</compile_context>

<pallas_src>
import jax
import jax.numpy as jnp
from jax import lax
from jax.experimental import pallas as pl
from jax.experimental.pallas import tpu as pltpu

# ---- synthetic config (small shapes, consistent with the module) ----
N_CLASSES = 5
VOCAB_SIZE = 30
HIDDEN = 32
NUM_LAYERS = 2
BATCH = 2
SEQ = 8
C_PAD = 128  # lane-dense classifier output width


def text_classify_kernel(tok_ref, emb_ref, wih_ref, whh_ref, b_ref,
                         wlin_ref, blin_ref, out_ref):
    # tok_ref : (S*B, 1) int32 in VMEM, time-major rows r = t*B + b
    # emb_ref : (V, H)  f32
    # wih/whh : (L, H, H) pre-transposed so the cell is  h = tanh(x@Wih + h@Whh + b)
    # b_ref   : (L, 1, H)  fused b_ih + b_hh
    # wlin/blin : (H, 128) / (1, 128)  zero-padded classifier
    B = out_ref.shape[0]
    SB = tok_ref.shape[0]
    S = SB // B
    V, H = emb_ref.shape
    L = wih_ref.shape[0]

    # ---- nn.Embedding as a one-hot MXU matmul (no scalar gather loop) ----
    tok = tok_ref[...]                                          # (S*B, 1) int32
    iota = lax.broadcasted_iota(jnp.int32, (SB, V), 1)
    one_hot = (iota == tok).astype(jnp.float32)                 # (S*B, V)
    x0 = jnp.dot(one_hot, emb_ref[...],
                 preferred_element_type=jnp.float32)            # (S*B, H)

    # Hoist all weight loads out of the unrolled recurrence.
    wih = [wih_ref[l] for l in range(L)]
    whh = [whh_ref[l] for l in range(L)]
    bias = [b_ref[l] for l in range(L)]

    # Layer-0 input projection hoisted over all timesteps (one MXU matmul,
    # bias added once).
    xp0 = jnp.dot(x0, wih[0], preferred_element_type=jnp.float32) + bias[0]

    # ---- stacked tanh-RNN, wavefront-interleaved across layers ----
    # At wavefront iteration t, layer l processes time step s = t - l.  Layers
    # are visited in descending order so hs[l-1] still holds layer l-1's output
    # at time s (produced at iteration t-1).  Layer l>0's input projection is
    # done per step, keeping the two layers' dependency chains independent.
    hs = [jnp.zeros((B, H), jnp.float32) for _ in range(L)]
    pooled = None
    for t in range(S + L - 1):                       # static unroll
        for l in reversed(range(L)):
            s = t - l
            if 0 <= s < S:
                if l == 0:
                    x_in = xp0[s * B:(s + 1) * B, :]
                else:
                    x_in = jnp.dot(hs[l - 1], wih[l],
                                   preferred_element_type=jnp.float32) + bias[l]
                hs[l] = jnp.tanh(
                    x_in + jnp.dot(hs[l], whh[l],
                                   preferred_element_type=jnp.float32))
                if l == L - 1:
                    # MaxPool1d over the sequence, computed on the fly.
                    pooled = hs[l] if s == 0 else jnp.maximum(pooled, hs[l])

    # ---- Linear(hidden, n_classes), lane-dense (128-wide) store ----
    out_ref[...] = (jnp.dot(pooled, wlin_ref[...],
                            preferred_element_type=jnp.float32)
                    + blin_ref[...])


def text_classify_forward(token_ids, emb, wih, whh, b, wlin, blin):
    B, S = token_ids.shape
    H = emb.shape[-1]
    C = wlin.shape[-1]

    # Time-major token rows (r = t*B + b) so per-step slices are contiguous.
    tok_tm = token_ids.T.reshape(S * B, 1).astype(jnp.int32)

    # Pad the classifier to a lane-dense (128-wide) output; slice after the call.
    wlin_pad = jnp.zeros((H, C_PAD), jnp.float32).at[:, :C].set(wlin)
    blin_pad = jnp.zeros((1, C_PAD), jnp.float32).at[:, :C].set(blin)

    vmem = pl.BlockSpec(memory_space=pltpu.MemorySpace.VMEM)

    out_pad = pl.pallas_call(
        text_classify_kernel,
        out_shape=jax.ShapeDtypeStruct((B, C_PAD), jnp.float32),
        in_specs=[vmem] * 7,
        out_specs=vmem,
    )(tok_tm, emb, wih, whh, b, wlin_pad, blin_pad)
    return out_pad[:, :C]


def reference_forward(token_ids, emb, wih, whh, b, wlin, blin):
    """Pure-JAX reference of the same PyTorch forward (for correctness check)."""
    x = jnp.take(emb, token_ids, axis=0)              # (B, S, H)
    L = wih.shape[0]
    B, S, H = x.shape
    for l in range(L):
        h = jnp.zeros((B, H), jnp.float32)
        outs = []
        for t in range(S):
            h = jnp.tanh(x[:, t, :] @ wih[l] + h @ whh[l] + b[l])
            outs.append(h)
        x = jnp.stack(outs, axis=1)
    pooled = jnp.max(x, axis=1)                       # MaxPool1d over seq
    return pooled @ wlin + blin


if __name__ == "__main__":
    key = jax.random.PRNGKey(0)
    k_tok, k_emb, k_wih, k_whh, k_b, k_wl, k_bl = jax.random.split(key, 7)

    token_ids = jax.random.randint(k_tok, (BATCH, SEQ), 0, VOCAB_SIZE,
                                   dtype=jnp.int32)

    emb = 0.1 * jax.random.normal(k_emb, (VOCAB_SIZE, HIDDEN), jnp.float32)
    emb = emb.at[0].set(0.0)  # padding_idx=0 row is zero, like nn.Embedding(padding_idx=0)

    wih = 0.1 * jax.random.normal(k_wih, (NUM_LAYERS, HIDDEN, HIDDEN), jnp.float32)
    whh = 0.1 * jax.random.normal(k_whh, (NUM_LAYERS, HIDDEN, HIDDEN), jnp.float32)
    b = 0.1 * jax.random.normal(k_b, (NUM_LAYERS, 1, HIDDEN), jnp.float32)  # b_ih + b_hh
    wlin = 0.1 * jax.random.normal(k_wl, (HIDDEN, N_CLASSES), jnp.float32)
    blin = 0.1 * jax.random.normal(k_bl, (1, N_CLASSES), jnp.float32)

    pred = text_classify_forward(token_ids, emb, wih, whh, b, wlin, blin)
    jax.block_until_ready(pred)
    assert pred.shape == (BATCH, N_CLASSES)

    ref = reference_forward(token_ids, emb, wih, whh, b, wlin, blin)
    assert jnp.allclose(pred, ref, atol=2e-4, rtol=2e-4), (pred, ref)

    print("KERNEL_OK")
</pallas_src>

<mosaic_0001>
module attributes {stable_mosaic.version = 11 : i64} {
  func.func @text_classify_kernel(%arg0: memref<16x1xi32, #tpu.memory_space<vmem>>, %arg1: memref<30x32xf32, #tpu.memory_space<vmem>>, %arg2: memref<2x32x32xf32, #tpu.memory_space<vmem>>, %arg3: memref<2x32x32xf32, #tpu.memory_space<vmem>>, %arg4: memref<2x1x32xf32, #tpu.memory_space<vmem>>, %arg5: memref<32x128xf32, #tpu.memory_space<vmem>>, %arg6: memref<1x128xf32, #tpu.memory_space<vmem>>, %arg7: memref<2x128xf32, #tpu.memory_space<vmem>>) attributes {dimension_semantics = [], scalar_prefetch = 0 : i64, scratch_operands = 0 : i64, tpu.core_type = #tpu.core_type<tc>} {
    %c0 = arith.constant 0 : index
    %c0_0 = arith.constant 0 : index
    %0 = vector.load %arg0[%c0, %c0_0] : memref<16x1xi32, #tpu.memory_space<vmem>>, vector<16x1xi32>
    %1 = tpu.iota {dimensions = array<i32: 1>} : vector<16x30xi32>
    %2 = vector.broadcast %0 : vector<16x1xi32> to vector<16x30xi32>
    %3 = arith.cmpi eq, %1, %2 : vector<16x30xi32>
    %4 = arith.extui %3 : vector<16x30xi1> to vector<16x30xi32>
    %5 = arith.sitofp %4 : vector<16x30xi32> to vector<16x30xf32>
    %c0_1 = arith.constant 0 : index
    %c0_2 = arith.constant 0 : index
    %6 = vector.load %arg1[%c0_1, %c0_2] : memref<30x32xf32, #tpu.memory_space<vmem>>, vector<30x32xf32>
    %cst = arith.constant dense<0.000000e+00> : vector<16x32xf32>
    %7 = tpu.matmul %5, %6, %cst {dimension_numbers = #tpu.dot_dimension_numbers<[1], [0], [0], [1], [0, 0, 1, 1], [], []>} : vector<16x30xf32>, vector<30x32xf32>, vector<16x32xf32> -> vector<16x32xf32>
    %c0_3 = arith.constant 0 : index
    %c0_4 = arith.constant 0 : index
    %c0_5 = arith.constant 0 : index
    %8 = vector.load %arg2[%c0_3, %c0_4, %c0_5] : memref<2x32x32xf32, #tpu.memory_space<vmem>>, vector<1x32x32xf32>
    %9 = vector.shape_cast %8 : vector<1x32x32xf32> to vector<32x32xf32>
    %c1 = arith.constant 1 : index
    %c0_6 = arith.constant 0 : index
    %c0_7 = arith.constant 0 : index
    %10 = vector.load %arg2[%c1, %c0_6, %c0_7] : memref<2x32x32xf32, #tpu.memory_space<vmem>>, vector<1x32x32xf32>
    %11 = vector.shape_cast %10 : vector<1x32x32xf32> to vector<32x32xf32>
    %c0_8 = arith.constant 0 : index
    %c0_9 = arith.constant 0 : index
    %c0_10 = arith.constant 0 : index
    %12 = vector.load %arg3[%c0_8, %c0_9, %c0_10] : memref<2x32x32xf32, #tpu.memory_space<vmem>>, vector<1x32x32xf32>
    %13 = vector.shape_cast %12 : vector<1x32x32xf32> to vector<32x32xf32>
    %c1_11 = arith.constant 1 : index
    %c0_12 = arith.constant 0 : index
    %c0_13 = arith.constant 0 : index
    %14 = vector.load %arg3[%c1_11, %c0_12, %c0_13] : memref<2x32x32xf32, #tpu.memory_space<vmem>>, vector<1x32x32xf32>
    %15 = vector.shape_cast %14 : vector<1x32x32xf32> to vector<32x32xf32>
    %c0_14 = arith.constant 0 : index
    %c0_15 = arith.constant 0 : index
    %c0_16 = arith.constant 0 : index
    %16 = vector.load %arg4[%c0_14, %c0_15, %c0_16] : memref<2x1x32xf32, #tpu.memory_space<vmem>>, vector<1x1x32xf32>
    %17 = vector.shape_cast %16 : vector<1x1x32xf32> to vector<1x32xf32>
    %c1_17 = arith.constant 1 : index
    %c0_18 = arith.constant 0 : index
    %c0_19 = arith.constant 0 : index
    %18 = vector.load %arg4[%c1_17, %c0_18, %c0_19] : memref<2x1x32xf32, #tpu.memory_space<vmem>>, vector<1x1x32xf32>
    %19 = vector.shape_cast %18 : vector<1x1x32xf32> to vector<1x32xf32>
    %cst_20 = arith.constant dense<0.000000e+00> : vector<16x32xf32>
    %20 = tpu.matmul %7, %9, %cst_20 {dimension_numbers = #tpu.dot_dimension_numbers<[1], [0], [0], [1], [0, 0, 1, 1], [], []>} : vector<16x32xf32>, vector<32x32xf32>, vector<16x32xf32> -> vector<16x32xf32>
    %21 = vector.broadcast %17 : vector<1x32xf32> to vector<16x32xf32>
    %22 = arith.addf %20, %21 : vector<16x32xf32>
    %cst_21 = arith.constant 0.000000e+00 : f32
    %23 = vector.broadcast %cst_21 : f32 to vector<2x32xf32>
    %cst_22 = arith.constant 0.000000e+00 : f32
    %24 = vector.broadcast %cst_22 : f32 to vector<2x32xf32>
    %25 = vector.extract_strided_slice %22 {offsets = [0, 0], sizes = [2, 32], strides = [1, 1]} : vector<16x32xf32> to vector<2x32xf32>
    %cst_23 = arith.constant dense<0.000000e+00> : vector<2x32xf32>
    %26 = tpu.matmul %23, %13, %cst_23 {dimension_numbers = #tpu.dot_dimension_numbers<[1], [0], [0], [1], [0, 0, 1, 1], [], []>} : vector<2x32xf32>, vector<32x32xf32>, vector<2x32xf32> -> vector<2x32xf32>
    %27 = arith.addf %25, %26 : vector<2x32xf32>
    %28 = math.tanh %27 : vector<2x32xf32>
    %cst_24 = arith.constant dense<0.000000e+00> : vector<2x32xf32>
    %29 = tpu.matmul %28, %11, %cst_24 {dimension_numbers = #tpu.dot_dimension_numbers<[1], [0], [0], [1], [0, 0, 1, 1], [], []>} : vector<2x32xf32>, vector<32x32xf32>, vector<2x32xf32> -> vector<2x32xf32>
    %30 = vector.broadcast %19 : vector<1x32xf32> to vector<2x32xf32>
    %31 = arith.addf %29, %30 : vector<2x32xf32>
    %cst_25 = arith.constant dense<0.000000e+00> : vector<2x32xf32>
    %32 = tpu.matmul %24, %15, %cst_25 {dimension_numbers = #tpu.dot_dimension_numbers<[1], [0], [0], [1], [0, 0, 1, 1], [], []>} : vector<2x32xf32>, vector<32x32xf32>, vector<2x32xf32> -> vector<2x32xf32>
    %33 = arith.addf %31, %32 : vector<2x32xf32>
    %34 = math.tanh %33 : vector<2x32xf32>
    %35 = vector.extract_strided_slice %22 {offsets = [2, 0], sizes = [2, 32], strides = [1, 1]} : vector<16x32xf32> to vector<2x32xf32>
    %cst_26 = arith.constant dense<0.000000e+00> : vector<2x32xf32>
    %36 = tpu.matmul %28, %13, %cst_26 {dimension_numbers = #tpu.dot_dimension_numbers<[1], [0], [0], [1], [0, 0, 1, 1], [], []>} : vector<2x32xf32>, vector<32x32xf32>, vector<2x32xf32> -> vector<2x32xf32>
    %37 = arith.addf %35, %36 : vector<2x32xf32>
    %38 = math.tanh %37 : vector<2x32xf32>
    %cst_27 = arith.constant dense<0.000000e+00> : vector<2x32xf32>
    %39 = tpu.matmul %38, %11, %cst_27 {dimension_numbers = #tpu.dot_dimension_numbers<[1], [0], [0], [1], [0, 0, 1, 1], [], []>} : vector<2x32xf32>, vector<32x32xf32>, vector<2x32xf32> -> vector<2x32xf32>
    %40 = vector.broadcast %19 : vector<1x32xf32> to vector<2x32xf32>
    %41 = arith.addf %39, %40 : vector<2x32xf32>
    %cst_28 = arith.constant dense<0.000000e+00> : vector<2x32xf32>
    %42 = tpu.matmul %34, %15, %cst_28 {dimension_numbers = #tpu.dot_dimension_numbers<[1], [0], [0], [1], [0, 0, 1, 1], [], []>} : vector<2x32xf32>, vector<32x32xf32>, vector<2x32xf32> -> vector<2x32xf32>
    %43 = arith.addf %41, %42 : vector<2x32xf32>
    %44 = math.tanh %43 : vector<2x32xf32>
    %45 = arith.maximumf %34, %44 : vector<2x32xf32>
    %46 = vector.extract_strided_slice %22 {offsets = [4, 0], sizes = [2, 32], strides = [1, 1]} : vector<16x32xf32> to vector<2x32xf32>
    %cst_29 = arith.constant dense<0.000000e+00> : vector<2x32xf32>
    %47 = tpu.matmul %38, %13, %cst_29 {dimension_numbers = #tpu.dot_dimension_numbers<[1], [0], [0], [1], [0, 0, 1, 1], [], []>} : vector<2x32xf32>, vector<32x32xf32>, vector<2x32xf32> -> vector<2x32xf32>
    %48 = arith.addf %46, %47 : vector<2x32xf32>
    %49 = math.tanh %48 : vector<2x32xf32>
    %cst_30 = arith.constant dense<0.000000e+00> : vector<2x32xf32>
    %50 = tpu.matmul %49, %11, %cst_30 {dimension_numbers = #tpu.dot_dimension_numbers<[1], [0], [0], [1], [0, 0, 1, 1], [], []>} : vector<2x32xf32>, vector<32x32xf32>, vector<2x32xf32> -> vector<2x32xf32>
    %51 = vector.broadcast %19 : vector<1x32xf32> to vector<2x32xf32>
    %52 = arith.addf %50, %51 : vector<2x32xf32>
    %cst_31 = arith.constant dense<0.000000e+00> : vector<2x32xf32>
    %53 = tpu.matmul %44, %15, %cst_31 {dimension_numbers = #tpu.dot_dimension_numbers<[1], [0], [0], [1], [0, 0, 1, 1], [], []>} : vector<2x32xf32>, vector<32x32xf32>, vector<2x32xf32> -> vector<2x32xf32>
    %54 = arith.addf %52, %53 : vector<2x32xf32>
    %55 = math.tanh %54 : vector<2x32xf32>
    %56 = arith.maximumf %45, %55 : vector<2x32xf32>
    %57 = vector.extract_strided_slice %22 {offsets = [6, 0], sizes = [2, 32], strides = [1, 1]} : vector<16x32xf32> to vector<2x32xf32>
    %cst_32 = arith.constant dense<0.000000e+00> : vector<2x32xf32>
    %58 = tpu.matmul %49, %13, %cst_32 {dimension_numbers = #tpu.dot_dimension_numbers<[1], [0], [0], [1], [0, 0, 1, 1], [], []>} : vector<2x32xf32>, vector<32x32xf32>, vector<2x32xf32> -> vector<2x32xf32>
    %59 = arith.addf %57, %58 : vector<2x32xf32>
    %60 = math.tanh %59 : vector<2x32xf32>
    %cst_33 = arith.constant dense<0.000000e+00> : vector<2x32xf32>
    %61 = tpu.matmul %60, %11, %cst_33 {dimension_numbers = #tpu.dot_dimension_numbers<[1], [0], [0], [1], [0, 0, 1, 1], [], []>} : vector<2x32xf32>, vector<32x32xf32>, vector<2x32xf32> -> vector<2x32xf32>
    %62 = vector.broadcast %19 : vector<1x32xf32> to vector<2x32xf32>
    %63 = arith.addf %61, %62 : vector<2x32xf32>
    %cst_34 = arith.constant dense<0.000000e+00> : vector<2x32xf32>
    %64 = tpu.matmul %55, %15, %cst_34 {dimension_numbers = #tpu.dot_dimension_numbers<[1], [0], [0], [1], [0, 0, 1, 1], [], []>} : vector<2x32xf32>, vector<32x32xf32>, vector<2x32xf32> -> vector<2x32xf32>
    %65 = arith.addf %63, %64 : vector<2x32xf32>
    %66 = math.tanh %65 : vector<2x32xf32>
    %67 = arith.maximumf %56, %66 : vector<2x32xf32>
    %68 = vector.extract_strided_slice %22 {offsets = [8, 0], sizes = [2, 32], strides = [1, 1]} : vector<16x32xf32> to vector<2x32xf32>
    %cst_35 = arith.constant dense<0.000000e+00> : vector<2x32xf32>
    %69 = tpu.matmul %60, %13, %cst_35 {dimension_numbers = #tpu.dot_dimension_numbers<[1], [0], [0], [1], [0, 0, 1, 1], [], []>} : vector<2x32xf32>, vector<32x32xf32>, vector<2x32xf32> -> vector<2x32xf32>
    %70 = arith.addf %68, %69 : vector<2x32xf32>
    %71 = math.tanh %70 : vector<2x32xf32>
    %cst_36 = arith.constant dense<0.000000e+00> : vector<2x32xf32>
    %72 = tpu.matmul %71, %11, %cst_36 {dimension_numbers = #tpu.dot_dimension_numbers<[1], [0], [0], [1], [0, 0, 1, 1], [], []>} : vector<2x32xf32>, vector<32x32xf32>, vector<2x32xf32> -> vector<2x32xf32>
    %73 = vector.broadcast %19 : vector<1x32xf32> to vector<2x32xf32>
    %74 = arith.addf %72, %73 : vector<2x32xf32>
    %cst_37 = arith.constant dense<0.000000e+00> : vector<2x32xf32>
    %75 = tpu.matmul %66, %15, %cst_37 {dimension_numbers = #tpu.dot_dimension_numbers<[1], [0], [0], [1], [0, 0, 1, 1], [], []>} : vector<2x32xf32>, vector<32x32xf32>, vector<2x32xf32> -> vector<2x32xf32>
    %76 = arith.addf %74, %75 : vector<2x32xf32>
    %77 = math.tanh %76 : vector<2x32xf32>
    %78 = arith.maximumf %67, %77 : vector<2x32xf32>
    %79 = vector.extract_strided_slice %22 {offsets = [10, 0], sizes = [2, 32], strides = [1, 1]} : vector<16x32xf32> to vector<2x32xf32>
    %cst_38 = arith.constant dense<0.000000e+00> : vector<2x32xf32>
    %80 = tpu.matmul %71, %13, %cst_38 {dimension_numbers = #tpu.dot_dimension_numbers<[1], [0], [0], [1], [0, 0, 1, 1], [], []>} : vector<2x32xf32>, vector<32x32xf32>, vector<2x32xf32> -> vector<2x32xf32>
    %81 = arith.addf %79, %80 : vector<2x32xf32>
    %82 = math.tanh %81 : vector<2x32xf32>
    %cst_39 = arith.constant dense<0.000000e+00> : vector<2x32xf32>
    %83 = tpu.matmul %82, %11, %cst_39 {dimension_numbers = #tpu.dot_dimension_numbers<[1], [0], [0], [1], [0, 0, 1, 1], [], []>} : vector<2x32xf32>, vector<32x32xf32>, vector<2x32xf32> -> vector<2x32xf32>
    %84 = vector.broadcast %19 : vector<1x32xf32> to vector<2x32xf32>
    %85 = arith.addf %83, %84 : vector<2x32xf32>
    %cst_40 = arith.constant dense<0.000000e+00> : vector<2x32xf32>
    %86 = tpu.matmul %77, %15, %cst_40 {dimension_numbers = #tpu.dot_dimension_numbers<[1], [0], [0], [1], [0, 0, 1, 1], [], []>} : vector<2x32xf32>, vector<32x32xf32>, vector<2x32xf32> -> vector<2x32xf32>
    %87 = arith.addf %85, %86 : vector<2x32xf32>
    %88 = math.tanh %87 : vector<2x32xf32>
    %89 = arith.maximumf %78, %88 : vector<2x32xf32>
    %90 = vector.extract_strided_slice %22 {offsets = [12, 0], sizes = [2, 32], strides = [1, 1]} : vector<16x32xf32> to vector<2x32xf32>
    %cst_41 = arith.constant dense<0.000000e+00> : vector<2x32xf32>
    %91 = tpu.matmul %82, %13, %cst_41 {dimension_numbers = #tpu.dot_dimension_numbers<[1], [0], [0], [1], [0, 0, 1, 1], [], []>} : vector<2x32xf32>, vector<32x32xf32>, vector<2x32xf32> -> vector<2x32xf32>
    %92 = arith.addf %90, %91 : vector<2x32xf32>
    %93 = math.tanh %92 : vector<2x32xf32>
    %cst_42 = arith.constant dense<0.000000e+00> : vector<2x32xf32>
    %94 = tpu.matmul %93, %11, %cst_42 {dimension_numbers = #tpu.dot_dimension_numbers<[1], [0], [0], [1], [0, 0, 1, 1], [], []>} : vector<2x32xf32>, vector<32x32xf32>, vector<2x32xf32> -> vector<2x32xf32>
    %95 = vector.broadcast %19 : vector<1x32xf32> to vector<2x32xf32>
    %96 = arith.addf %94, %95 : vector<2x32xf32>
    %cst_43 = arith.constant dense<0.000000e+00> : vector<2x32xf32>
    %97 = tpu.matmul %88, %15, %cst_43 {dimension_numbers = #tpu.dot_dimension_numbers<[1], [0], [0], [1], [0, 0, 1, 1], [], []>} : vector<2x32xf32>, vector<32x32xf32>, vector<2x32xf32> -> vector<2x32xf32>
    %98 = arith.addf %96, %97 : vector<2x32xf32>
    %99 = math.tanh %98 : vector<2x32xf32>
    %100 = arith.maximumf %89, %99 : vector<2x32xf32>
    %101 = vector.extract_strided_slice %22 {offsets = [14, 0], sizes = [2, 32], strides = [1, 1]} : vector<16x32xf32> to vector<2x32xf32>
    %cst_44 = arith.constant dense<0.000000e+00> : vector<2x32xf32>
    %102 = tpu.matmul %93, %13, %cst_44 {dimension_numbers = #tpu.dot_dimension_numbers<[1], [0], [0], [1], [0, 0, 1, 1], [], []>} : vector<2x32xf32>, vector<32x32xf32>, vector<2x32xf32> -> vector<2x32xf32>
    %103 = arith.addf %101, %102 : vector<2x32xf32>
    %104 = math.tanh %103 : vector<2x32xf32>
    %cst_45 = arith.constant dense<0.000000e+00> : vector<2x32xf32>
    %105 = tpu.matmul %104, %11, %cst_45 {dimension_numbers = #tpu.dot_dimension_numbers<[1], [0], [0], [1], [0, 0, 1, 1], [], []>} : vector<2x32xf32>, vector<32x32xf32>, vector<2x32xf32> -> vector<2x32xf32>
    %106 = vector.broadcast %19 : vector<1x32xf32> to vector<2x32xf32>
    %107 = arith.addf %105, %106 : vector<2x32xf32>
    %cst_46 = arith.constant dense<0.000000e+00> : vector<2x32xf32>
    %108 = tpu.matmul %99, %15, %cst_46 {dimension_numbers = #tpu.dot_dimension_numbers<[1], [0], [0], [1], [0, 0, 1, 1], [], []>} : vector<2x32xf32>, vector<32x32xf32>, vector<2x32xf32> -> vector<2x32xf32>
    %109 = arith.addf %107, %108 : vector<2x32xf32>
    %110 = math.tanh %109 : vector<2x32xf32>
    %111 = arith.maximumf %100, %110 : vector<2x32xf32>
    %c0_47 = arith.constant 0 : index
    %c0_48 = arith.constant 0 : index
    %112 = vector.load %arg5[%c0_47, %c0_48] : memref<32x128xf32, #tpu.memory_space<vmem>>, vector<32x128xf32>
    %cst_49 = arith.constant dense<0.000000e+00> : vector<2x128xf32>
    %113 = tpu.matmul %111, %112, %cst_49 {dimension_numbers = #tpu.dot_dimension_numbers<[1], [0], [0], [1], [0, 0, 1, 1], [], []>} : vector<2x32xf32>, vector<32x128xf32>, vector<2x128xf32> -> vector<2x128xf32>
    %c0_50 = arith.constant 0 : index
    %c0_51 = arith.constant 0 : index
    %114 = vector.load %arg6[%c0_50, %c0_51] : memref<1x128xf32, #tpu.memory_space<vmem>>, vector<1x128xf32>
    %115 = vector.broadcast %114 : vector<1x128xf32> to vector<2x128xf32>
    %116 = arith.addf %113, %115 : vector<2x128xf32>
    %c0_52 = arith.constant 0 : index
    %c0_53 = arith.constant 0 : index
    %117 = vector.load %arg7[%c0_52, %c0_53] : memref<2x128xf32, #tpu.memory_space<vmem>>, vector<2x128xf32>
    tpu.vector_store %arg7[%c0_52, %c0_53], %116 {strides = array<i32>} : memref<2x128xf32, #tpu.memory_space<vmem>>, vector<2x128xf32>,
    return
  }
}

</mosaic_0001>

<llo_original>
// kernel: tpu_custom_call.1
$region0: #{tpu_custom_call.1}
  #allocation0 [shape = 'u32[]', space=smem, size = 0x4, offset = 0x4, fixed_abs, tag = 'smem constant byte address 0x4 - core index']
  #allocation1 [shape = 'u32[144,128]{1,0:T(1,128)}', space=vmem, size = 0x12000, scoped, tag = 'internal scratch']
  %s0 = inlined_call_operand.vmem [shape: s32[16,1], index: 0, kind: input, shape index: {}]
  %s1 = inlined_call_operand.hbm [shape: f32[30,32], index: 1, kind: input, shape index: {}]
  %s2 = inlined_call_operand.hbm [shape: f32[2,32,32], index: 2, kind: input, shape index: {}]
  %s3 = inlined_call_operand.hbm [shape: f32[2,32,32], index: 3, kind: input, shape index: {}]
  %s4 = inlined_call_operand.vmem [shape: f32[2,1,32], index: 4, kind: input, shape index: {}]
  %s5 = inlined_call_operand.vmem [shape: f32[32,128], index: 5, kind: input, shape index: {}]
  %s6 = inlined_call_operand.vmem [shape: f32[1,128], index: 6, kind: input, shape index: {}]
  %s7 = inlined_call_operand.hbm [shape: f32[2,128], index: 7, kind: output, shape index: {}]
  %s8 = sld [smem:[#allocation0]]
  $region50: #{tpu_custom_call.1} parent=0
    _
  %s10 = ssub.s32 1, %s8
  %s11 = scalar_select 0, %s10, %s8
  $region1: #{tpu_custom_call.1} parent=0
    #allocation2 [shape = 'u8[16384]{0}', space=vmem, size = 0x4000, scoped, tag = 'input window, operand 1, single buffered']
    #allocation3 [shape = 's32[1]{0}', space=sflag, size = 0x4, scoped, tag = 'scoped memory for tpu_custom_call.1']
    #allocation4 [shape = 's32[1]{0}', space=sflag, size = 0x4, scoped, tag = 'scoped memory for tpu_custom_call.1']
    #allocation5 [shape = 'u8[32768]{0}', space=vmem, size = 0x8000, scoped, tag = 'input window, operand 2, single buffered']
    #allocation6 [shape = 's32[1]{0}', space=sflag, size = 0x4, scoped, tag = 'scoped memory for tpu_custom_call.1']
    #allocation7 [shape = 'u8[32768]{0}', space=vmem, size = 0x8000, scoped, tag = 'input window, operand 3, single buffered']
    #allocation8 [shape = 'u8[1024]{0}', space=vmem, size = 0x400, scoped, tag = 'output window, operand 0, single buffered']
    %12 = vsyncpa [#allocation3], 0
    %13 = vsyncpa [#allocation6], 0
    %14 = vsyncpa [#allocation4], 0
    // Predicated region
    $region2: #{tpu_custom_call.1} parent=1 // pred_check
      _
    $region3: #{tpu_custom_call.1} parent=1 // pred_check_branch
      %16 = sbr.rel (0) target = $region5
    $region4: #{tpu_custom_call.1} parent=1 // pred_region
      _
    $region5: #{tpu_custom_call.1} parent=1 // pred_fallthru
      _
    // Predicated region
    $region6: #{tpu_custom_call.1} parent=1 // pred_check
      _
    $region7: #{tpu_custom_call.1} parent=1 // pred_check_branch
      %18 = sbr.rel (0) target = $region9
    $region8: #{tpu_custom_call.1} parent=1 // pred_region
      %s20 = ssub.s32 512, 512
      %21 = vsyncadd [#allocation3], %s20
      %s22 = sshll.u32 [#allocation2], 4
      %s23 = int_to_ptr.vmem [resolvable:$true] %s22
      %28 = dma.hbm_to_vmem [thread:$0]  %s1, 512, %s23, [#allocation3], 128, 128, 8
    $region9: #{tpu_custom_call.1} parent=1 // pred_fallthru
      _
    // Predicated region
    $region10: #{tpu_custom_call.1} parent=1 // pred_check
      _
    $region11: #{tpu_custom_call.1} parent=1 // pred_check_branch
      %30 = sbr.rel (0) target = $region13
    $region12: #{tpu_custom_call.1} parent=1 // pred_region
      %s32 = ssub.s32 1024, 1024
      %33 = vsyncadd [#allocation6], %s32
      %s34 = sshll.u32 [#allocation5], 4
      %s35 = int_to_ptr.vmem [resolvable:$true] %s34
      %40 = dma.hbm_to_vmem [thread:$0]  %s2, 1024, %s35, [#allocation6], 128, 128, 8
    $region13: #{tpu_custom_call.1} parent=1 // pred_fallthru
      _
    // Predicated region
    $region14: #{tpu_custom_call.1} parent=1 // pred_check
      _
    $region15: #{tpu_custom_call.1} parent=1 // pred_check_branch
      %42 = sbr.rel (0) target = $region17
    $region16: #{tpu_custom_call.1} parent=1 // pred_region
      %s44 = ssub.s32 1024, 1024
      %45 = vsyncadd [#allocation6], %s44
      %s46 = sshll.u32 [#allocation7], 4
      %s47 = int_to_ptr.vmem [resolvable:$true] %s46
      %52 = dma.hbm_to_vmem [thread:$0]  %s3, 1024, %s47, [#allocation6], 128, 128, 8
    $region17: #{tpu_custom_call.1} parent=1 // pred_fallthru
      _
    // Predicated region
    $region18: #{tpu_custom_call.1} parent=1 // pred_check
      _
    $region19: #{tpu_custom_call.1} parent=1 // pred_check_branch
      %54 = sbr.rel (0) target = $region21
    $region20: #{tpu_custom_call.1} parent=1 // pred_region
      _
    $region21: #{tpu_custom_call.1} parent=1 // pred_fallthru
      _
    // Predicated region
    $region22: #{tpu_custom_call.1} parent=1 // pred_check
      _
    $region23: #{tpu_custom_call.1} parent=1 // pred_check_branch
      %56 = sbr.rel (0) target = $region25
    $region24: #{tpu_custom_call.1} parent=1 // pred_region
      _
    $region25: #{tpu_custom_call.1} parent=1 // pred_fallthru
      _
    // Predicated region
    $region26: #{tpu_custom_call.1} parent=1 // pred_check
      _
    $region27: #{tpu_custom_call.1} parent=1 // pred_check_branch
      %58 = sbr.rel (0) target = $region29
    $region28: #{tpu_custom_call.1} parent=1 // pred_region
      _
    $region29: #{tpu_custom_call.1} parent=1 // pred_fallthru
      _
    // Predicated region
    $region30: #{tpu_custom_call.1} parent=1 // pred_check
      _
    $region31: #{tpu_custom_call.1} parent=1 // pred_check_branch
      %60 = sbr.rel (0) target = $region33
    $region32: #{tpu_custom_call.1} parent=1 // pred_region
      %61 = dma.done [#allocation3], 512
    $region33: #{tpu_custom_call.1} parent=1 // pred_fallthru
      _
    // Predicated region
    $region34: #{tpu_custom_call.1} parent=1 // pred_check
      _
    $region35: #{tpu_custom_call.1} parent=1 // pred_check_branch
      %63 = sbr.rel (0) target = $region37
    $region36: #{tpu_custom_call.1} parent=1 // pred_region
      %64 = dma.done [#allocation6], 1024
    $region37: #{tpu_custom_call.1} parent=1 // pred_fallthru
      _
    // Predicated region
    $region38: #{tpu_custom_call.1} parent=1 // pred_check
      _
    $region39: #{tpu_custom_call.1} parent=1 // pred_check_branch
      %66 = sbr.rel (0) target = $region41
    $region40: #{tpu_custom_call.1} parent=1 // pred_region
      %67 = dma.done [#allocation6], 1024
    $region41: #{tpu_custom_call.1} parent=1 // pred_fallthru
      _
    %v68 = vld [vmem:[%s0] sm:$0xff]
    %v69 = vld [vmem:[%s0 + $0x8] sm:$0xff]
    %v70 = vlaneseq
    %v71 = vand.u32 %v70, 127
    %72 = vset.pattern.permute.xlu0 0
    %73 = vperm.xlu0 %72, %v68
    %v74 = vpop.permute.xlu0 %73
    %75 = vset.pattern.permute.xlu0 0
    %76 = vperm.xlu0 %75, %v69
    %v77 = vpop.permute.xlu0 %76
    %vm78 = vcmp.eq.s32.totalorder %v71, %v74
    %vm79 = vcmp.eq.s32.totalorder %v71, %v77
    %v80 = vsel %vm78, 1, 0
    %v81 = vsel %vm79, 1, 0
    %v82 = vcvt.s32.f32 %v80
    %v83 = vcvt.s32.f32 %v81
    %v84 = vld [vmem:[#allocation2] sm:$0xff]
    %v85 = vld [vmem:[#allocation2 + $0x8] sm:$0xff]
    %v86 = vld [vmem:[#allocation2 + $0x10] sm:$0xff]
    %v87 = vld [vmem:[#allocation2 + $0x18] sm:$0x3f]
    %vm88 = vcmask 244736
    %v90 = vsel %vm88, %v82, 0
    %v93 = vsel %vm88, %v83, 0
    %vm95 = vcmask 1045504
    %v97 = vsel %vm95, %v87, 0
    %99 = vmatprep.subr.mxu0 0.0
    %100 = vmatpush1.msra.mxu0 %v84
    %101 = vmatprep.subr.mxu0 0.0
    %102 = vmatpush1.msra.mxu0 %v85
    %103 = vmatprep.subr.mxu0 0.0
    %104 = vmatpush1.msra.mxu0 %v86
    %105 = vmatprep.subr.mxu0 0.0
    %106 = vmatpush1.msra.mxu0 %v97
    %107 = vmatprep.subr.mxu0 0.0
    %108 = vmatpush1.msra.mxu0 0.0
    %109 = vmatprep.subr.mxu0 0.0
    %110 = vmatpush1.msra.mxu0 0.0
    %111 = vmatprep.subr.mxu0 0.0
    %112 = vmatpush1.msra.mxu0 0.0
    %113 = vmatprep.subr.mxu0 0.0
    %114 = vmatpush1.msra.mxu0 0.0
    %115 = vmatprep.subr.mxu0 0.0
    %116 = vmatpush1.msra.mxu0 0.0
    %117 = vmatprep.subr.mxu0 0.0
    %118 = vmatpush1.msra.mxu0 0.0
    %119 = vmatprep.subr.mxu0 0.0
    %120 = vmatpush1.msra.mxu0 0.0
    %121 = vmatprep.subr.mxu0 0.0
    %122 = vmatpush1.msra.mxu0 0.0
    %123 = vmatprep.subr.mxu0 0.0
    %124 = vmatpush1.msra.mxu0 0.0
    %125 = vmatprep.subr.mxu0 0.0
    %126 = vmatpush1.msra.mxu0 0.0
    %127 = vmatprep.subr.mxu0 0.0
    %128 = vmatpush1.msra.mxu0 0.0
    %129 = vmatprep.subr.mxu0 0.0
    %130 = vmatpush1.msra.mxu0 0.0
    %131 = vmatprep.subr.mxu0 0.0
    %132 = vmatpush1.msra.mxu0 0.0
    %133 = vmatprep.subr.mxu0 0.0
    %134 = vmatpush1.msra.mxu0 0.0
    %135 = vmatprep.subr.mxu0 0.0
    %136 = vmatpush1.msra.mxu0 0.0
    %137 = vmatprep.subr.mxu0 0.0
    %138 = vmatpush1.msra.mxu0 0.0
    %139 = vmatprep.subr.mxu0 0.0
    %140 = vmatpush1.msra.mxu0 0.0
    %141 = vmatprep.subr.mxu0 0.0
    %142 = vmatpush1.msra.mxu0 0.0
    %143 = vmatprep.subr.mxu0 0.0
    %144 = vmatpush1.msra.mxu0 0.0
    %145 = vmatprep.subr.mxu0 0.0
    %146 = vmatpush1.msra.mxu0 0.0
    %147 = vmatprep.subr.mxu0 0.0
    %148 = vmatpush1.msra.mxu0 0.0
    %149 = vmatprep.subr.mxu0 0.0
    %150 = vmatpush1.msra.mxu0 0.0
    %151 = vmatprep.subr.mxu0 0.0
    %152 = vmatpush1.msra.mxu0 0.0
    %153 = vmatprep.subr.mxu0 0.0
    %154 = vmatpush1.msra.mxu0 0.0
    %155 = vmatprep.subr.mxu0 0.0
    %156 = vmatpush1.msra.mxu0 0.0
    %157 = vmatprep.subr.mxu0 0.0
    %158 = vmatpush1.msra.mxu0 0.0
    %159 = vmatprep.subr.mxu0 0.0
    %160 = vmatpush1.msra.mxu0 0.0
    %161 = vmatprep.subr.mxu0 0.0
    %162 = vmatpush1.msra.mxu0 0.0
    %163 = vmatprep.mubr.f32.mxu0 0.0
    %164 = vmatmul.mubr.f32.gmra.mrb[0].mxu0 %v90
    %v165 = vpop.f32.mrb[0].mxu0
    %v166 = vadd.f32 0.0, %v165
    %v167 = vpop.f32.mrb[0].mxu0
    %168 = vmatprep.mubr.f32.mxu0 0.0
    %169 = vmatmul.mubr.f32.gmra.mrb[0].mxu0 %v93
    %v170 = vpop.f32.mrb[0].mxu0
    %v171 = vadd.f32 0.0, %v170
    %v172 = vpop.f32.mrb[0].mxu0
    %173 = vdwg.mxu0
    %v174 = vld [vmem:[#allocation5] sm:$0xff]
    %v175 = vld [vmem:[#allocation5 + $0x8] sm:$0xff]
    %v176 = vld [vmem:[#allocation5 + $0x10] sm:$0xff]
    %v177 = vld [vmem:[#allocation5 + $0x18] sm:$0xff]
    %s178 = scalar_lea.vmem [#allocation5], 32
    %v179 = vld [vmem:[%s178] sm:$0xff]
    %v180 = vld [vmem:[%s178 + $0x8] sm:$0xff]
    %v181 = vld [vmem:[%s178 + $0x10] sm:$0xff]
    %v182 = vld [vmem:[%s178 + $0x18] sm:$0xff]
    %v183 = vld [vmem:[#allocation7] sm:$0xff]
    %v184 = vld [vmem:[#allocation7 + $0x8] sm:$0xff]
    %v185 = vld [vmem:[#allocation7 + $0x10] sm:$0xff]
    %v186 = vld [vmem:[#allocation7 + $0x18] sm:$0xff]
    %s187 = scalar_lea.vmem [#allocation7], 32
    %v188 = vld [vmem:[%s187] sm:$0xff]
    %v189 = vld [vmem:[%s187 + $0x8] sm:$0xff]
    %v190 = vld [vmem:[%s187 + $0x10] sm:$0xff]
    %v191 = vld [vmem:[%s187 + $0x18] sm:$0xff]
    %v192 = vld [vmem:[%s4] sm:$0x1]
    %s193 = scalar_lea.vmem %s4, 1
    %v194 = vld [vmem:[%s193] sm:$0x1]
    %v196 = vlaneseq
    %v197 = vshrl.u32 %v196, 7
    %v198 = vsub.s32 0, %v197
    %v199 = vrot.slane %v192, %v198
    %vm201 = vcmask 261120
    %v203 = vsel %vm201, %v166, 0
    %v206 = vsel %vm201, %v171, 0
    %208 = vmatprep.subr.mxu0 0.0
    %209 = vmatpush1.msra.mxu0 %v174
    %210 = vmatprep.subr.mxu0 0.0
    %211 = vmatpush1.msra.mxu0 %v175
    %212 = vmatprep.subr.mxu0 0.0
    %213 = vmatpush1.msra.mxu0 %v176
    %214 = vmatprep.subr.mxu0 0.0
    %215 = vmatpush1.msra.mxu0 %v177
    %216 = vmatprep.subr.mxu0 0.0
    %217 = vmatpush1.msra.mxu0 0.0
    %218 = vmatprep.subr.mxu0 0.0
    %219 = vmatpush1.msra.mxu0 0.0
    %220 = vmatprep.subr.mxu0 0.0
    %221 = vmatpush1.msra.mxu0 0.0
    %222 = vmatprep.subr.mxu0 0.0
    %223 = vmatpush1.msra.mxu0 0.0
    %224 = vmatprep.subr.mxu0 0.0
    %225 = vmatpush1.msra.mxu0 0.0
    %226 = vmatprep.subr.mxu0 0.0
    %227 = vmatpush1.msra.mxu0 0.0
    %228 = vmatprep.subr.mxu0 0.0
    %229 = vmatpush1.msra.mxu0 0.0
    %230 = vmatprep.subr.mxu0 0.0
    %231 = vmatpush1.msra.mxu0 0.0
    %232 = vmatprep.subr.mxu0 0.0
    %233 = vmatpush1.msra.mxu0 0.0
    %234 = vmatprep.subr.mxu0 0.0
    %235 = vmatpush1.msra.mxu0 0.0
    %236 = vmatprep.subr.mxu0 0.0
    %237 = vmatpush1.msra.mxu0 0.0
    %238 = vmatprep.subr.mxu0 0.0
    %239 = vmatpush1.msra.mxu0 0.0
    %240 = vmatprep.subr.mxu0 0.0
    %241 = vmatpush1.msra.mxu0 0.0
    %242 = vmatprep.subr.mxu0 0.0
    %243 = vmatpush1.msra.mxu0 0.0
    %244 = vmatprep.subr.mxu0 0.0
    %245 = vmatpush1.msra.mxu0 0.0
    %246 = vmatprep.subr.mxu0 0.0
    %247 = vmatpush1.msra.mxu0 0.0
    %248 = vmatprep.subr.mxu0 0.0
    %249 = vmatpush1.msra.mxu0 0.0
    %250 = vmatprep.subr.mxu0 0.0
    %251 = vmatpush1.msra.mxu0 0.0
    %252 = vmatprep.subr.mxu0 0.0
    %253 = vmatpush1.msra.mxu0 0.0
    %254 = vmatprep.subr.mxu0 0.0
    %255 = vmatpush1.msra.mxu0 0.0
    %256 = vmatprep.subr.mxu0 0.0
    %257 = vmatpush1.msra.mxu0 0.0
    %258 = vmatprep.subr.mxu0 0.0
    %259 = vmatpush1.msra.mxu0 0.0
    %260 = vmatprep.subr.mxu0 0.0
    %261 = vmatpush1.msra.mxu0 0.0
    %262 = vmatprep.subr.mxu0 0.0
    %263 = vmatpush1.msra.mxu0 0.0
    %264 = vmatprep.subr.mxu0 0.0
    %265 = vmatpush1.msra.mxu0 0.0
    %266 = vmatprep.subr.mxu0 0.0
    %267 = vmatpush1.msra.mxu0 0.0
    %268 = vmatprep.subr.mxu0 0.0
    %269 = vmatpush1.msra.mxu0 0.0
    %270 = vmatprep.subr.mxu0 0.0
    %271 = vmatpush1.msra.mxu0 0.0
    %272 = vmatprep.mubr.f32.mxu0 0.0
    %273 = vmatmul.mubr.f32.gmra.mrb[0].mxu0 %v203
    %v274 = vpop.f32.mrb[0].mxu0
    %v275 = vadd.f32 %v199, %v274
    %v276 = vpop.f32.mrb[0].mxu0
    %277 = vmatprep.mubr.f32.mxu0 0.0
    %278 = vmatmul.mubr.f32.gmra.mrb[0].mxu0 %v206
    %v279 = vpop.f32.mrb[0].mxu0
    %v280 = vadd.f32 %v199, %v279
    %v281 = vpop.f32.mrb[0].mxu0
    %282 = vdwg.mxu0
    %v284 = vsel %vm201, 0.0, 0
    %286 = vmatprep.subr.mxu0 0.0
    %287 = vmatpush1.msra.mxu0 %v183
    %288 = vmatprep.subr.mxu0 0.0
    %289 = vmatpush1.msra.mxu0 %v184
    %290 = vmatprep.subr.mxu0 0.0
    %291 = vmatpush1.msra.mxu0 %v185
    %292 = vmatprep.subr.mxu0 0.0
    %293 = vmatpush1.msra.mxu0 %v186
    %294 = vmatprep.subr.mxu0 0.0
    %295 = vmatpush1.msra.mxu0 0.0
    %296 = vmatprep.subr.mxu0 0.0
    %297 = vmatpush1.msra.mxu0 0.0
    %298 = vmatprep.subr.mxu0 0.0
    %299 = vmatpush1.msra.mxu0 0.0
    %300 = vmatprep.subr.mxu0 0.0
    %301 = vmatpush1.msra.mxu0 0.0
    %302 = vmatprep.subr.mxu0 0.0
    %303 = vmatpush1.msra.mxu0 0.0
    %304 = vmatprep.subr.mxu0 0.0
    %305 = vmatpush1.msra.mxu0 0.0
    %306 = vmatprep.subr.mxu0 0.0
    %307 = vmatpush1.msra.mxu0 0.0
    %308 = vmatprep.subr.mxu0 0.0
    %309 = vmatpush1.msra.mxu0 0.0
    %310 = vmatprep.subr.mxu0 0.0
    %311 = vmatpush1.msra.mxu0 0.0
    %312 = vmatprep.subr.mxu0 0.0
    %313 = vmatpush1.msra.mxu0 0.0
    %314 = vmatprep.subr.mxu0 0.0
    %315 = vmatpush1.msra.mxu0 0.0
    %316 = vmatprep.subr.mxu0 0.0
    %317 = vmatpush1.msra.mxu0 0.0
    %318 = vmatprep.subr.mxu0 0.0
    %319 = vmatpush1.msra.mxu0 0.0
    %320 = vmatprep.subr.mxu0 0.0
    %321 = vmatpush1.msra.mxu0 0.0
    %322 = vmatprep.subr.mxu0 0.0
    %323 = vmatpush1.msra.mxu0 0.0
    %324 = vmatprep.subr.mxu0 0.0
    %325 = vmatpush1.msra.mxu0 0.0
    %326 = vmatprep.subr.mxu0 0.0
    %327 = vmatpush1.msra.mxu0 0.0
    %328 = vmatprep.subr.mxu0 0.0
    %329 = vmatpush1.msra.mxu0 0.0
    %330 = vmatprep.subr.mxu0 0.0
    %331 = vmatpush1.msra.mxu0 0.0
    %332 = vmatprep.subr.mxu0 0.0
    %333 = vmatpush1.msra.mxu0 0.0
    %334 = vmatprep.subr.mxu0 0.0
    %335 = vmatpush1.msra.mxu0 0.0
    %336 = vmatprep.subr.mxu0 0.0
    %337 = vmatpush1.msra.mxu0 0.0
    %338 = vmatprep.subr.mxu0 0.0
    %339 = vmatpush1.msra.mxu0 0.0
    %340 = vmatprep.subr.mxu0 0.0
    %341 = vmatpush1.msra.mxu0 0.0
    %342 = vmatprep.subr.mxu0 0.0
    %343 = vmatpush1.msra.mxu0 0.0
    %344 = vmatprep.subr.mxu0 0.0
    %345 = vmatpush1.msra.mxu0 0.0
    %346 = vmatprep.subr.mxu0 0.0
    %347 = vmatpush1.msra.mxu0 0.0
    %348 = vmatprep.subr.mxu0 0.0
    %349 = vmatpush1.msra.mxu0 0.0
    %350 = vmatprep.mubr.f32.mxu0 0.0
    %351 = vmatmul.mubr.f32.gmra.mrb[0].mxu0 %v284
    %v352 = vpop.f32.mrb[0].mxu0
    %v353 = vadd.f32 0.0, %v352
    %v354 = vpop.f32.mrb[0].mxu0
    %355 = vdwg.mxu0
    %v356 = vadd.f32 %v275, %v353
    %v357 = vtanh.pop %v356
    %v359 = vlaneseq
    %v360 = vshrl.u32 %v359, 7
    %v361 = vsub.s32 0, %v360
    %v362 = vrot.slane %v194, %v361
    %v365 = vsel %vm201, %v357, 0
    %367 = vmatprep.subr.mxu0 0.0
    %368 = vmatpush1.msra.mxu0 %v179
    %369 = vmatprep.subr.mxu0 0.0
    %370 = vmatpush1.msra.mxu0 %v180
    %371 = vmatprep.subr.mxu0 0.0
    %372 = vmatpush1.msra.mxu0 %v181
    %373 = vmatprep.subr.mxu0 0.0
    %374 = vmatpush1.msra.mxu0 %v182
    %375 = vmatprep.subr.mxu0 0.0
    %376 = vmatpush1.msra.mxu0 0.0
    %377 = vmatprep.subr.mxu0 0.0
    %378 = vmatpush1.msra.mxu0 0.0
    %379 = vmatprep.subr.mxu0 0.0
    %380 = vmatpush1.msra.mxu0 0.0
    %381 = vmatprep.subr.mxu0 0.0
    %382 = vmatpush1.msra.mxu0 0.0
    %383 = vmatprep.subr.mxu0 0.0
    %384 = vmatpush1.msra.mxu0 0.0
    %385 = vmatprep.subr.mxu0 0.0
    %386 = vmatpush1.msra.mxu0 0.0
    %387 = vmatprep.subr.mxu0 0.0
    %388 = vmatpush1.msra.mxu0 0.0
    %389 = vmatprep.subr.mxu0 0.0
    %390 = vmatpush1.msra.mxu0 0.0
    %391 = vmatprep.subr.mxu0 0.0
    %392 = vmatpush1.msra.mxu0 0.0
    %393 = vmatprep.subr.mxu0 0.0
    %394 = vmatpush1.msra.mxu0 0.0
    %395 = vmatprep.subr.mxu0 0.0
    %396 = vmatpush1.msra.mxu0 0.0
    %397 = vmatprep.subr.mxu0 0.0
    %398 = vmatpush1.msra.mxu0 0.0
    %399 = vmatprep.subr.mxu0 0.0
    %400 = vmatpush1.msra.mxu0 0.0
    %401 = vmatprep.subr.mxu0 0.0
    %402 = vmatpush1.msra.mxu0 0.0
    %403 = vmatprep.subr.mxu0 0.0
    %404 = vmatpush1.msra.mxu0 0.0
    %405 = vmatprep.subr.mxu0 0.0
    %406 = vmatpush1.msra.mxu0 0.0
    %407 = vmatprep.subr.mxu0 0.0
    %408 = vmatpush1.msra.mxu0 0.0
    %409 = vmatprep.subr.mxu0 0.0
    %410 = vmatpush1.msra.mxu0 0.0
    %411 = vmatprep.subr.mxu0 0.0
    %412 = vmatpush1.msra.mxu0 0.0
    %413 = vmatprep.subr.mxu0 0.0
    %414 = vmatpush1.msra.mxu0 0.0
    %415 = vmatprep.subr.mxu0 0.0
    %416 = vmatpush1.msra.mxu0 0.0
    %417 = vmatprep.subr.mxu0 0.0
    %418 = vmatpush1.msra.mxu0 0.0
    %419 = vmatprep.subr.mxu0 0.0
    %420 = vmatpush1.msra.mxu0 0.0
    %421 = vmatprep.subr.mxu0 0.0
    %422 = vmatpush1.msra.mxu0 0.0
    %423 = vmatprep.subr.mxu0 0.0
    %424 = vmatpush1.msra.mxu0 0.0
    %425 = vmatprep.subr.mxu0 0.0
    %426 = vmatpush1.msra.mxu0 0.0
    %427 = vmatprep.subr.mxu0 0.0
    %428 = vmatpush1.msra.mxu0 0.0
    %429 = vmatprep.subr.mxu0 0.0
    %430 = vmatpush1.msra.mxu0 0.0
    %431 = vmatprep.mubr.f32.mxu0 0.0
    %432 = vmatmul.mubr.f32.gmra.mrb[0].mxu0 %v365
    %v433 = vpop.f32.mrb[0].mxu0
    %v434 = vadd.f32 %v362, %v433
    %v435 = vpop.f32.mrb[0].mxu0
    %436 = vdwg.mxu0
    %437 = vmatprep.subr.mxu0 0.0
    %438 = vmatpush1.msra.mxu0 %v188
    %439 = vmatprep.subr.mxu0 0.0
    %440 = vmatpush1.msra.mxu0 %v189
    %441 = vmatprep.subr.mxu0 0.0
    %442 = vmatpush1.msra.mxu0 %v190
    %443 = vmatprep.subr.mxu0 0.0
    %444 = vmatpush1.msra.mxu0 %v191
    %445 = vmatprep.subr.mxu0 0.0
    %446 = vmatpush1.msra.mxu0 0.0
    %447 = vmatprep.subr.mxu0 0.0
    %448 = vmatpush1.msra.mxu0 0.0
    %449 = vmatprep.subr.mxu0 0.0
    %450 = vmatpush1.msra.mxu0 0.0
    %451 = vmatprep.subr.mxu0 0.0
    %452 = vmatpush1.msra.mxu0 0.0
    %453 = vmatprep.subr.mxu0 0.0
    %454 = vmatpush1.msra.mxu0 0.0
    %455 = vmatprep.subr.mxu0 0.0
    %456 = vmatpush1.msra.mxu0 0.0
    %457 = vmatprep.subr.mxu0 0.0
    %458 = vmatpush1.msra.mxu0 0.0
    %459 = vmatprep.subr.mxu0 0.0
    %460 = vmatpush1.msra.mxu0 0.0
    %461 = vmatprep.subr.mxu0 0.0
    %462 = vmatpush1.msra.mxu0 0.0
    %463 = vmatprep.subr.mxu0 0.0
    %464 = vmatpush1.msra.mxu0 0.0
    %465 = vmatprep.subr.mxu0 0.0
    %466 = vmatpush1.msra.mxu0 0.0
    %467 = vmatprep.subr.mxu0 0.0
    %468 = vmatpush1.msra.mxu0 0.0
    %469 = vmatprep.subr.mxu0 0.0
    %470 = vmatpush1.msra.mxu0 0.0
    %471 = vmatprep.subr.mxu0 0.0
    %472 = vmatpush1.msra.mxu0 0.0
    %473 = vmatprep.subr.mxu0 0.0
    %474 = vmatpush1.msra.mxu0 0.0
    %475 = vmatprep.subr.mxu0 0.0
    %476 = vmatpush1.msra.mxu0 0.0
    %477 = vmatprep.subr.mxu0 0.0
    %478 = vmatpush1.msra.mxu0 0.0
    %479 = vmatprep.subr.mxu0 0.0
    %480 = vmatpush1.msra.mxu0 0.0
    %481 = vmatprep.subr.mxu0 0.0
    %482 = vmatpush1.msra.mxu0 0.0
    %483 = vmatprep.subr.mxu0 0.0
    %484 = vmatpush1.msra.mxu0 0.0
    %485 = vmatprep.subr.mxu0 0.0
    %486 = vmatpush1.msra.mxu0 0.0
    %487 = vmatprep.subr.mxu0 0.0
    %488 = vmatpush1.msra.mxu0 0.0
    %489 = vmatprep.subr.mxu0 0.0
    %490 = vmatpush1.msra.mxu0 0.0
    %491 = vmatprep.subr.mxu0 0.0
    %492 = vmatpush1.msra.mxu0 0.0
    %493 = vmatprep.subr.mxu0 0.0
    %494 = vmatpush1.msra.mxu0 0.0
    %495 = vmatprep.subr.mxu0 0.0
    %496 = vmatpush1.msra.mxu0 0.0
    %497 = vmatprep.subr.mxu0 0.0
    %498 = vmatpush1.msra.mxu0 0.0
    %499 = vmatprep.subr.mxu0 0.0
    %500 = vmatpush1.msra.mxu0 0.0
    %501 = vmatprep.mubr.f32.mxu0 0.0
    %502 = vmatmul.mubr.f32.gmra.mrb[0].mxu0 %v284
    %v503 = vpop.f32.mrb[0].mxu0
    %v504 = vadd.f32 0.0, %v503
    %v505 = vpop.f32.mrb[0].mxu0
    %506 = vdwg.mxu0
    %v507 = vadd.f32 %v434, %v504
    %v508 = vtanh.pop %v507
    %509 = vmatprep.subr.mxu0 0.0
    %510 = vmatpush1.msra.mxu0 %v183
    %511 = vmatprep.subr.mxu0 0.0
    %512 = vmatpush1.msra.mxu0 %v184
    %513 = vmatprep.subr.mxu0 0.0
    %514 = vmatpush1.msra.mxu0 %v185
    %515 = vmatprep.subr.mxu0 0.0
    %516 = vmatpush1.msra.mxu0 %v186
    %517 = vmatprep.subr.mxu0 0.0
    %518 = vmatpush1.msra.mxu0 0.0
    %519 = vmatprep.subr.mxu0 0.0
    %520 = vmatpush1.msra.mxu0 0.0
    %521 = vmatprep.subr.mxu0 0.0
    %522 = vmatpush1.msra.mxu0 0.0
    %523 = vmatprep.subr.mxu0 0.0
    %524 = vmatpush1.msra.mxu0 0.0
    %525 = vmatprep.subr.mxu0 0.0
    %526 = vmatpush1.msra.mxu0 0.0
    %527 = vmatprep.subr.mxu0 0.0
    %528 = vmatpush1.msra.mxu0 0.0
    %529 = vmatprep.subr.mxu0 0.0
    %530 = vmatpush1.msra.mxu0 0.0
    %531 = vmatprep.subr.mxu0 0.0
    %532 = vmatpush1.msra.mxu0 0.0
    %533 = vmatprep.subr.mxu0 0.0
    %534 = vmatpush1.msra.mxu0 0.0
    %535 = vmatprep.subr.mxu0 0.0
    %536 = vmatpush1.msra.mxu0 0.0
    %537 = vmatprep.subr.mxu0 0.0
    %538 = vmatpush1.msra.mxu0 0.0
    %539 = vmatprep.subr.mxu0 0.0
    %540 = vmatpush1.msra.mxu0 0.0
    %541 = vmatprep.subr.mxu0 0.0
    %542 = vmatpush1.msra.mxu0 0.0
    %543 = vmatprep.subr.mxu0 0.0
    %544 = vmatpush1.msra.mxu0 0.0
    %545 = vmatprep.subr.mxu0 0.0
    %546 = vmatpush1.msra.mxu0 0.0
    %547 = vmatprep.subr.mxu0 0.0
    %548 = vmatpush1.msra.mxu0 0.0
    %549 = vmatprep.subr.mxu0 0.0
    %550 = vmatpush1.msra.mxu0 0.0
    %551 = vmatprep.subr.mxu0 0.0
    %552 = vmatpush1.msra.mxu0 0.0
    %553 = vmatprep.subr.mxu0 0.0
    %554 = vmatpush1.msra.mxu0 0.0
    %555 = vmatprep.subr.mxu0 0.0
    %556 = vmatpush1.msra.mxu0 0.0
    %557 = vmatprep.subr.mxu0 0.0
    %558 = vmatpush1.msra.mxu0 0.0
    %559 = vmatprep.subr.mxu0 0.0
    %560 = vmatpush1.msra.mxu0 0.0
    %561 = vmatprep.subr.mxu0 0.0
    %562 = vmatpush1.msra.mxu0 0.0
    %563 = vmatprep.subr.mxu0 0.0
    %564 = vmatpush1.msra.mxu0 0.0
    %565 = vmatprep.subr.mxu0 0.0
    %566 = vmatpush1.msra.mxu0 0.0
    %567 = vmatprep.subr.mxu0 0.0
    %568 = vmatpush1.msra.mxu0 0.0
    %569 = vmatprep.subr.mxu0 0.0
    %570 = vmatpush1.msra.mxu0 0.0
    %571 = vmatprep.subr.mxu0 0.0
    %572 = vmatpush1.msra.mxu0 0.0
    %573 = vmatprep.mubr.f32.mxu0 0.0
    %574 = vmatmul.mubr.f32.gmra.mrb[0].mxu0 %v365
    %v575 = vpop.f32.mrb[0].mxu0
    %v576 = vadd.f32 0.0, %v575
    %v577 = vpop.f32.mrb[0].mxu0
    %578 = vdwg.mxu0
    %v580 = vrot.slane %v576, 6
    %v582 = vadd.f32 %v275, %v580
    %v583 = vtanh.pop %v582
    %v585 = vrot.slane %v583, 2
    %v586 = vsel %vm201, %v585, 0
    %588 = vmatprep.subr.mxu0 0.0
    %589 = vmatpush1.msra.mxu0 %v179
    %590 = vmatprep.subr.mxu0 0.0
    %591 = vmatpush1.msra.mxu0 %v180
    %592 = vmatprep.subr.mxu0 0.0
    %593 = vmatpush1.msra.mxu0 %v181
    %594 = vmatprep.subr.mxu0 0.0
    %595 = vmatpush1.msra.mxu0 %v182
    %596 = vmatprep.subr.mxu0 0.0
    %597 = vmatpush1.msra.mxu0 0.0
    %598 = vmatprep.subr.mxu0 0.0
    %599 = vmatpush1.msra.mxu0 0.0
    %600 = vmatprep.subr.mxu0 0.0
    %601 = vmatpush1.msra.mxu0 0.0
    %602 = vmatprep.subr.mxu0 0.0
    %603 = vmatpush1.msra.mxu0 0.0
    %604 = vmatprep.subr.mxu0 0.0
    %605 = vmatpush1.msra.mxu0 0.0
    %606 = vmatprep.subr.mxu0 0.0
    %607 = vmatpush1.msra.mxu0 0.0
    %608 = vmatprep.subr.mxu0 0.0
    %609 = vmatpush1.msra.mxu0 0.0
    %610 = vmatprep.subr.mxu0 0.0
    %611 = vmatpush1.msra.mxu0 0.0
    %612 = vmatprep.subr.mxu0 0.0
    %613 = vmatpush1.msra.mxu0 0.0
    %614 = vmatprep.subr.mxu0 0.0
    %615 = vmatpush1.msra.mxu0 0.0
    %616 = vmatprep.subr.mxu0 0.0
    %617 = vmatpush1.msra.mxu0 0.0
    %618 = vmatprep.subr.mxu0 0.0
    %619 = vmatpush1.msra.mxu0 0.0
    %620 = vmatprep.subr.mxu0 0.0
    %621 = vmatpush1.msra.mxu0 0.0
    %622 = vmatprep.subr.mxu0 0.0
    %623 = vmatpush1.msra.mxu0 0.0
    %624 = vmatprep.subr.mxu0 0.0
    %625 = vmatpush1.msra.mxu0 0.0
    %626 = vmatprep.subr.mxu0 0.0
    %627 = vmatpush1.msra.mxu0 0.0
    %628 = vmatprep.subr.mxu0 0.0
    %629 = vmatpush1.msra.mxu0 0.0
    %630 = vmatprep.subr.mxu0 0.0
    %631 = vmatpush1.msra.mxu0 0.0
    %632 = vmatprep.subr.mxu0 0.0
    %633 = vmatpush1.msra.mxu0 0.0
    %634 = vmatprep.subr.mxu0 0.0
    %635 = vmatpush1.msra.mxu0 0.0
    %636 = vmatprep.subr.mxu0 0.0
    %637 = vmatpush1.msra.mxu0 0.0
    %638 = vmatprep.subr.mxu0 0.0
    %639 = vmatpush1.msra.mxu0 0.0
    %640 = vmatprep.subr.mxu0 0.0
    %641 = vmatpush1.msra.mxu0 0.0
    %642 = vmatprep.subr.mxu0 0.0
    %643 = vmatpush1.msra.mxu0 0.0
    %644 = vmatprep.subr.mxu0 0.0
    %645 = vmatpush1.msra.mxu0 0.0
    %646 = vmatprep.subr.mxu0 0.0
    %647 = vmatpush1.msra.mxu0 0.0
    %648 = vmatprep.subr.mxu0 0.0
    %649 = vmatpush1.msra.mxu0 0.0
    %650 = vmatprep.subr.mxu0 0.0
    %651 = vmatpush1.msra.mxu0 0.0
    %652 = vmatprep.mubr.f32.mxu0 0.0
    %653 = vmatmul.mubr.f32.gmra.mrb[0].mxu0 %v586
    %v654 = vpop.f32.mrb[0].mxu0
    %v655 = vadd.f32 %v362, %v654
    %v656 = vpop.f32.mrb[0].mxu0
    %657 = vdwg.mxu0
    %v659 = vsel %vm201, %v508, 0
    %661 = vmatprep.subr.mxu0 0.0
    %662 = vmatpush1.msra.mxu0 %v188
    %663 = vmatprep.subr.mxu0 0.0
    %664 = vmatpush1.msra.mxu0 %v189
    %665 = vmatprep.subr.mxu0 0.0
    %666 = vmatpush1.msra.mxu0 %v190
    %667 = vmatprep.subr.mxu0 0.0
    %668 = vmatpush1.msra.mxu0 %v191
    %669 = vmatprep.subr.mxu0 0.0
    %670 = vmatpush1.msra.mxu0 0.0
    %671 = vmatprep.subr.mxu0 0.0
    %672 = vmatpush1.msra.mxu0 0.0
    %673 = vmatprep.subr.mxu0 0.0
    %674 = vmatpush1.msra.mxu0 0.0
    %675 = vmatprep.subr.mxu0 0.0
    %676 = vmatpush1.msra.mxu0 0.0
    %677 = vmatprep.subr.mxu0 0.0
    %678 = vmatpush1.msra.mxu0 0.0
    %679 = vmatprep.subr.mxu0 0.0
    %680 = vmatpush1.msra.mxu0 0.0
    %681 = vmatprep.subr.mxu0 0.0
    %682 = vmatpush1.msra.mxu0 0.0
    %683 = vmatprep.subr.mxu0 0.0
    %684 = vmatpush1.msra.mxu0 0.0
    %685 = vmatprep.subr.mxu0 0.0
    %686 = vmatpush1.msra.mxu0 0.0
    %687 = vmatprep.subr.mxu0 0.0
    %688 = vmatpush1.msra.mxu0 0.0
    %689 = vmatprep.subr.mxu0 0.0
    %690 = vmatpush1.msra.mxu0 0.0
    %691 = vmatprep.subr.mxu0 0.0
    %692 = vmatpush1.msra.mxu0 0.0
    %693 = vmatprep.subr.mxu0 0.0
    %694 = vmatpush1.msra.mxu0 0.0
    %695 = vmatprep.subr.mxu0 0.0
    %696 = vmatpush1.msra.mxu0 0.0
    %697 = vmatprep.subr.mxu0 0.0
    %698 = vmatpush1.msra.mxu0 0.0
    %699 = vmatprep.subr.mxu0 0.0
    %700 = vmatpush1.msra.mxu0 0.0
    %701 = vmatprep.subr.mxu0 0.0
    %702 = vmatpush1.msra.mxu0 0.0
    %703 = vmatprep.subr.mxu0 0.0
    %704 = vmatpush1.msra.mxu0 0.0
    %705 = vmatprep.subr.mxu0 0.0
    %706 = vmatpush1.msra.mxu0 0.0
    %707 = vmatprep.subr.mxu0 0.0
    %708 = vmatpush1.msra.mxu0 0.0
    %709 = vmatprep.subr.mxu0 0.0
    %710 = vmatpush1.msra.mxu0 0.0
    %711 = vmatprep.subr.mxu0 0.0
    %712 = vmatpush1.msra.mxu0 0.0
    %713 = vmatprep.subr.mxu0 0.0
    %714 = vmatpush1.msra.mxu0 0.0
    %715 = vmatprep.subr.mxu0 0.0
    %716 = vmatpush1.msra.mxu0 0.0
    %717 = vmatprep.subr.mxu0 0.0
    %718 = vmatpush1.msra.mxu0 0.0
    %719 = vmatprep.subr.mxu0 0.0
    %720 = vmatpush1.msra.mxu0 0.0
    %721 = vmatprep.subr.mxu0 0.0
    %722 = vmatpush1.msra.mxu0 0.0
    %723 = vmatprep.subr.mxu0 0.0
    %724 = vmatpush1.msra.mxu0 0.0
    %725 = vmatprep.mubr.f32.mxu0 0.0
    %726 = vmatmul.mubr.f32.gmra.mrb[0].mxu0 %v659
    %v727 = vpop.f32.mrb[0].mxu0
    %v728 = vadd.f32 0.0, %v727
    %v729 = vpop.f32.mrb[0].mxu0
    %730 = vdwg.mxu0
    %v731 = vadd.f32 %v655, %v728
    %v732 = vtanh.pop %v731
    %v733 = vmax.f32 %v508, %v732
    %734 = vmatprep.subr.mxu0 0.0
    %735 = vmatpush1.msra.mxu0 %v183
    %736 = vmatprep.subr.mxu0 0.0
    %737 = vmatpush1.msra.mxu0 %v184
    %738 = vmatprep.subr.mxu0 0.0
    %739 = vmatpush1.msra.mxu0 %v185
    %740 = vmatprep.subr.mxu0 0.0
    %741 = vmatpush1.msra.mxu0 %v186
    %742 = vmatprep.subr.mxu0 0.0
    %743 = vmatpush1.msra.mxu0 0.0
    %744 = vmatprep.subr.mxu0 0.0
    %745 = vmatpush1.msra.mxu0 0.0
    %746 = vmatprep.subr.mxu0 0.0
    %747 = vmatpush1.msra.mxu0 0.0
    %748 = vmatprep.subr.mxu0 0.0
    %749 = vmatpush1.msra.mxu0 0.0
    %750 = vmatprep.subr.mxu0 0.0
    %751 = vmatpush1.msra.mxu0 0.0
    %752 = vmatprep.subr.mxu0 0.0
    %753 = vmatpush1.msra.mxu0 0.0
    %754 = vmatprep.subr.mxu0 0.0
    %755 = vmatpush1.msra.mxu0 0.0
    %756 = vmatprep.subr.mxu0 0.0
    %757 = vmatpush1.msra.mxu0 0.0
    %758 = vmatprep.subr.mxu0 0.0
    %759 = vmatpush1.msra.mxu0 0.0
    %760 = vmatprep.subr.mxu0 0.0
    %761 = vmatpush1.msra.mxu0 0.0
    %762 = vmatprep.subr.mxu0 0.0
    %763 = vmatpush1.msra.mxu0 0.0
    %764 = vmatprep.subr.mxu0 0.0
    %765 = vmatpush1.msra.mxu0 0.0
    %766 = vmatprep.subr.mxu0 0.0
    %767 = vmatpush1.msra.mxu0 0.0
    %768 = vmatprep.subr.mxu0 0.0
    %769 = vmatpush1.msra.mxu0 0.0
    %770 = vmatprep.subr.mxu0 0.0
    %771 = vmatpush1.msra.mxu0 0.0
    %772 = vmatprep.subr.mxu0 0.0
    %773 = vmatpush1.msra.mxu0 0.0
    %774 = vmatprep.subr.mxu0 0.0
    %775 = vmatpush1.msra.mxu0 0.0
    %776 = vmatprep.subr.mxu0 0.0
    %777 = vmatpush1.msra.mxu0 0.0
    %778 = vmatprep.subr.mxu0 0.0
    %779 = vmatpush1.msra.mxu0 0.0
    %780 = vmatprep.subr.mxu0 0.0
    %781 = vmatpush1.msra.mxu0 0.0
    %782 = vmatprep.subr.mxu0 0.0
    %783 = vmatpush1.msra.mxu0 0.0
    %784 = vmatprep.subr.mxu0 0.0
    %785 = vmatpush1.msra.mxu0 0.0
    %786 = vmatprep.subr.mxu0 0.0
    %787 = vmatpush1.msra.mxu0 0.0
    %788 = vmatprep.subr.mxu0 0.0
    %789 = vmatpush1.msra.mxu0 0.0
    %790 = vmatprep.subr.mxu0 0.0
    %791 = vmatpush1.msra.mxu0 0.0
    %792 = vmatprep.subr.mxu0 0.0
    %793 = vmatpush1.msra.mxu0 0.0
    %794 = vmatprep.subr.mxu0 0.0
    %795 = vmatpush1.msra.mxu0 0.0
    %796 = vmatprep.subr.mxu0 0.0
    %797 = vmatpush1.msra.mxu0 0.0
    %798 = vmatprep.mubr.f32.mxu0 0.0
    %799 = vmatmul.mubr.f32.gmra.mrb[0].mxu0 %v586
    %v800 = vpop.f32.mrb[0].mxu0
    %v801 = vadd.f32 0.0, %v800
    %v802 = vpop.f32.mrb[0].mxu0
    %803 = vdwg.mxu0
    %v805 = vrot.slane %v801, 4
    %v807 = vadd.f32 %v275, %v805
    %v808 = vtanh.pop %v807
    %v810 = vrot.slane %v808, 4
    %v811 = vsel %vm201, %v810, 0
    %813 = vmatprep.subr.mxu0 0.0
    %814 = vmatpush1.msra.mxu0 %v179
    %815 = vmatprep.subr.mxu0 0.0
    %816 = vmatpush1.msra.mxu0 %v180
    %817 = vmatprep.subr.mxu0 0.0
    %818 = vmatpush1.msra.mxu0 %v181
    %819 = vmatprep.subr.mxu0 0.0
    %820 = vmatpush1.msra.mxu0 %v182
    %821 = vmatprep.subr.mxu0 0.0
    %822 = vmatpush1.msra.mxu0 0.0
    %823 = vmatprep.subr.mxu0 0.0
    %824 = vmatpush1.msra.mxu0 0.0
    %825 = vmatprep.subr.mxu0 0.0
    %826 = vmatpush1.msra.mxu0 0.0
    %827 = vmatprep.subr.mxu0 0.0
    %828 = vmatpush1.msra.mxu0 0.0
    %829 = vmatprep.subr.mxu0 0.0
    %830 = vmatpush1.msra.mxu0 0.0
    %831 = vmatprep.subr.mxu0 0.0
    %832 = vmatpush1.msra.mxu0 0.0
    %833 = vmatprep.subr.mxu0 0.0
    %834 = vmatpush1.msra.mxu0 0.0
    %835 = vmatprep.subr.mxu0 0.0
    %836 = vmatpush1.msra.mxu0 0.0
    %837 = vmatprep.subr.mxu0 0.0
    %838 = vmatpush1.msra.mxu0 0.0
    %839 = vmatprep.subr.mxu0 0.0
    %840 = vmatpush1.msra.mxu0 0.0
    %841 = vmatprep.subr.mxu0 0.0
    %842 = vmatpush1.msra.mxu0 0.0
    %843 = vmatprep.subr.mxu0 0.0
    %844 = vmatpush1.msra.mxu0 0.0
    %845 = vmatprep.subr.mxu0 0.0
    %846 = vmatpush1.msra.mxu0 0.0
    %847 = vmatprep.subr.mxu0 0.0
    %848 = vmatpush1.msra.mxu0 0.0
    %849 = vmatprep.subr.mxu0 0.0
    %850 = vmatpush1.msra.mxu0 0.0
    %851 = vmatprep.subr.mxu0 0.0
    %852 = vmatpush1.msra.mxu0 0.0
    %853 = vmatprep.subr.mxu0 0.0
    %854 = vmatpush1.msra.mxu0 0.0
    %855 = vmatprep.subr.mxu0 0.0
    %856 = vmatpush1.msra.mxu0 0.0
    %857 = vmatprep.subr.mxu0 0.0
    %858 = vmatpush1.msra.mxu0 0.0
    %859 = vmatprep.subr.mxu0 0.0
    %860 = vmatpush1.msra.mxu0 0.0
    %861 = vmatprep.subr.mxu0 0.0
    %862 = vmatpush1.msra.mxu0 0.0
    %863 = vmatprep.subr.mxu0 0.0
    %864 = vmatpush1.msra.mxu0 0.0
    %865 = vmatprep.subr.mxu0 0.0
    %866 = vmatpush1.msra.mxu0 0.0
    %867 = vmatprep.subr.mxu0 0.0
    %868 = vmatpush1.msra.mxu0 0.0
    %869 = vmatprep.subr.mxu0 0.0
    %870 = vmatpush1.msra.mxu0 0.0
    %871 = vmatprep.subr.mxu0 0.0
    %872 = vmatpush1.msra.mxu0 0.0
    %873 = vmatprep.subr.mxu0 0.0
    %874 = vmatpush1.msra.mxu0 0.0
    %875 = vmatprep.subr.mxu0 0.0
    %876 = vmatpush1.msra.mxu0 0.0
    %877 = vmatprep.mubr.f32.mxu0 0.0
    %878 = vmatmul.mubr.f32.gmra.mrb[0].mxu0 %v811
    %v879 = vpop.f32.mrb[0].mxu0
    %v880 = vadd.f32 %v362, %v879
    %v881 = vpop.f32.mrb[0].mxu0
    %882 = vdwg.mxu0
    %v884 = vsel %vm201, %v732, 0
    %886 = vmatprep.subr.mxu0 0.0
    %887 = vmatpush1.msra.mxu0 %v188
    %888 = vmatprep.subr.mxu0 0.0
    %889 = vmatpush1.msra.mxu0 %v189
    %890 = vmatprep.subr.mxu0 0.0
    %891 = vmatpush1.msra.mxu0 %v190
    %892 = vmatprep.subr.mxu0 0.0
    %893 = vmatpush1.msra.mxu0 %v191
    %894 = vmatprep.subr.mxu0 0.0
    %895 = vmatpush1.msra.mxu0 0.0
    %896 = vmatprep.subr.mxu0 0.0
    %897 = vmatpush1.msra.mxu0 0.0
    %898 = vmatprep.subr.mxu0 0.0
    %899 = vmatpush1.msra.mxu0 0.0
    %900 = vmatprep.subr.mxu0 0.0
    %901 = vmatpush1.msra.mxu0 0.0
    %902 = vmatprep.subr.mxu0 0.0
    %903 = vmatpush1.msra.mxu0 0.0
    %904 = vmatprep.subr.mxu0 0.0
    %905 = vmatpush1.msra.mxu0 0.0
    %906 = vmatprep.subr.mxu0 0.0
    %907 = vmatpush1.msra.mxu0 0.0
    %908 = vmatprep.subr.mxu0 0.0
    %909 = vmatpush1.msra.mxu0 0.0
    %910 = vmatprep.subr.mxu0 0.0
    %911 = vmatpush1.msra.mxu0 0.0
    %912 = vmatprep.subr.mxu0 0.0
    %913 = vmatpush1.msra.mxu0 0.0
    %914 = vmatprep.subr.mxu0 0.0
    %915 = vmatpush1.msra.mxu0 0.0
    %916 = vmatprep.subr.mxu0 0.0
    %917 = vmatpush1.msra.mxu0 0.0
    %918 = vmatprep.subr.mxu0 0.0
    %919 = vmatpush1.msra.mxu0 0.0
    %920 = vmatprep.subr.mxu0 0.0
    %921 = vmatpush1.msra.mxu0 0.0
    %922 = vmatprep.subr.mxu0 0.0
    %923 = vmatpush1.msra.mxu0 0.0
    %924 = vmatprep.subr.mxu0 0.0
    %925 = vmatpush1.msra.mxu0 0.0
    %926 = vmatprep.subr.mxu0 0.0
    %927 = vmatpush1.msra.mxu0 0.0
    %928 = vmatprep.subr.mxu0 0.0
    %929 = vmatpush1.msra.mxu0 0.0
    %930 = vmatprep.subr.mxu0 0.0
    %931 = vmatpush1.msra.mxu0 0.0
    %932 = vmatprep.subr.mxu0 0.0
    %933 = vmatpush1.msra.mxu0 0.0
    %934 = vmatprep.subr.mxu0 0.0
    %935 = vmatpush1.msra.mxu0 0.0
    %936 = vmatprep.subr.mxu0 0.0
    %937 = vmatpush1.msra.mxu0 0.0
    %938 = vmatprep.subr.mxu0 0.0
    %939 = vmatpush1.msra.mxu0 0.0
    %940 = vmatprep.subr.mxu0 0.0
    %941 = vmatpush1.msra.mxu0 0.0
    %942 = vmatprep.subr.mxu0 0.0
    %943 = vmatpush1.msra.mxu0 0.0
    %944 = vmatprep.subr.mxu0 0.0
    %945 = vmatpush1.msra.mxu0 0.0
    %946 = vmatprep.subr.mxu0 0.0
    %947 = vmatpush1.msra.mxu0 0.0
    %948 = vmatprep.subr.mxu0 0.0
    %949 = vmatpush1.msra.mxu0 0.0
    %950 = vmatprep.mubr.f32.mxu0 0.0
    %951 = vmatmul.mubr.f32.gmra.mrb[0].mxu0 %v884
    %v952 = vpop.f32.mrb[0].mxu0
    %v953 = vadd.f32 0.0, %v952
    %v954 = vpop.f32.mrb[0].mxu0
    %955 = vdwg.mxu0
    %v956 = vadd.f32 %v880, %v953
    %v957 = vtanh.pop %v956
    %v958 = vmax.f32 %v733, %v957
    %959 = vmatprep.subr.mxu0 0.0
    %960 = vmatpush1.msra.mxu0 %v183
    %961 = vmatprep.subr.mxu0 0.0
    %962 = vmatpush1.msra.mxu0 %v184
    %963 = vmatprep.subr.mxu0 0.0
    %964 = vmatpush1.msra.mxu0 %v185
    %965 = vmatprep.subr.mxu0 0.0
    %966 = vmatpush1.msra.mxu0 %v186
    %967 = vmatprep.subr.mxu0 0.0
    %968 = vmatpush1.msra.mxu0 0.0
    %969 = vmatprep.subr.mxu0 0.0
    %970 = vmatpush1.msra.mxu0 0.0
    %971 = vmatprep.subr.mxu0 0.0
    %972 = vmatpush1.msra.mxu0 0.0
    %973 = vmatprep.subr.mxu0 0.0
    %974 = vmatpush1.msra.mxu0 0.0
    %975 = vmatprep.subr.mxu0 0.0
    %976 = vmatpush1.msra.mxu0 0.0
    %977 = vmatprep.subr.mxu0 0.0
    %978 = vmatpush1.msra.mxu0 0.0
    %979 = vmatprep.subr.mxu0 0.0
    %980 = vmatpush1.msra.mxu0 0.0
    %981 = vmatprep.subr.mxu0 0.0
    %982 = vmatpush1.msra.mxu0 0.0
    %983 = vmatprep.subr.mxu0 0.0
    %984 = vmatpush1.msra.mxu0 0.0
    %985 = vmatprep.subr.mxu0 0.0
    %986 = vmatpush1.msra.mxu0 0.0
    %987 = vmatprep.subr.mxu0 0.0
    %988 = vmatpush1.msra.mxu0 0.0
    %989 = vmatprep.subr.mxu0 0.0
    %990 = vmatpush1.msra.mxu0 0.0
    %991 = vmatprep.subr.mxu0 0.0
    %992 = vmatpush1.msra.mxu0 0.0
    %993 = vmatprep.subr.mxu0 0.0
    %994 = vmatpush1.msra.mxu0 0.0
    %995 = vmatprep.subr.mxu0 0.0
    %996 = vmatpush1.msra.mxu0 0.0
    %997 = vmatprep.subr.mxu0 0.0
    %998 = vmatpush1.msra.mxu0 0.0
    %999 = vmatprep.subr.mxu0 0.0
    %1000 = vmatpush1.msra.mxu0 0.0
    %1001 = vmatprep.subr.mxu0 0.0
    %1002 = vmatpush1.msra.mxu0 0.0
    %1003 = vmatprep.subr.mxu0 0.0
    %1004 = vmatpush1.msra.mxu0 0.0
    %1005 = vmatprep.subr.mxu0 0.0
    %1006 = vmatpush1.msra.mxu0 0.0
    %1007 = vmatprep.subr.mxu0 0.0
    %1008 = vmatpush1.msra.mxu0 0.0
    %1009 = vmatprep.subr.mxu0 0.0
    %1010 = vmatpush1.msra.mxu0 0.0
    %1011 = vmatprep.subr.mxu0 0.0
    %1012 = vmatpush1.msra.mxu0 0.0
    %1013 = vmatprep.subr.mxu0 0.0
    %1014 = vmatpush1.msra.mxu0 0.0
    %1015 = vmatprep.subr.mxu0 0.0
    %1016 = vmatpush1.msra.mxu0 0.0
    %1017 = vmatprep.subr.mxu0 0.0
    %1018 = vmatpush1.msra.mxu0 0.0
    %1019 = vmatprep.subr.mxu0 0.0
    %1020 = vmatpush1.msra.mxu0 0.0
    %1021 = vmatprep.subr.mxu0 0.0
    %1022 = vmatpush1.msra.mxu0 0.0
    %1023 = vmatprep.mubr.f32.mxu0 0.0
    %1024 = vmatmul.mubr.f32.gmra.mrb[0].mxu0 %v811
    %v1025 = vpop.f32.mrb[0].mxu0
    %v1026 = vadd.f32 0.0, %v1025
    %v1027 = vpop.f32.mrb[0].mxu0
    %1028 = vdwg.mxu0
    %v1030 = vrot.slane %v1026, 2
    %v1032 = vadd.f32 %v275, %v1030
    %v1033 = vtanh.pop %v1032
    %v1035 = vrot.slane %v1033, 6
    %v1036 = vsel %vm201, %v1035, 0
    %1038 = vmatprep.subr.mxu0 0.0
    %1039 = vmatpush1.msra.mxu0 %v179
    %1040 = vmatprep.subr.mxu0 0.0
    %1041 = vmatpush1.msra.mxu0 %v180
    %1042 = vmatprep.subr.mxu0 0.0
    %1043 = vmatpush1.msra.mxu0 %v181
    %1044 = vmatprep.subr.mxu0 0.0
    %1045 = vmatpush1.msra.mxu0 %v182
    %1046 = vmatprep.subr.mxu0 0.0
    %1047 = vmatpush1.msra.mxu0 0.0
    %1048 = vmatprep.subr.mxu0 0.0
    %1049 = vmatpush1.msra.mxu0 0.0
    %1050 = vmatprep.subr.mxu0 0.0
    %1051 = vmatpush1.msra.mxu0 0.0
    %1052 = vmatprep.subr.mxu0 0.0
    %1053 = vmatpush1.msra.mxu0 0.0
    %1054 = vmatprep.subr.mxu0 0.0
    %1055 = vmatpush1.msra.mxu0 0.0
    %1056 = vmatprep.subr.mxu0 0.0
    %1057 = vmatpush1.msra.mxu0 0.0
    %1058 = vmatprep.subr.mxu0 0.0
    %1059 = vmatpush1.msra.mxu0 0.0
    %1060 = vmatprep.subr.mxu0 0.0
    %1061 = vmatpush1.msra.mxu0 0.0
    %1062 = vmatprep.subr.mxu0 0.0
    %1063 = vmatpush1.msra.mxu0 0.0
    %1064 = vmatprep.subr.mxu0 0.0
    %1065 = vmatpush1.msra.mxu0 0.0
    %1066 = vmatprep.subr.mxu0 0.0
    %1067 = vmatpush1.msra.mxu0 0.0
    %1068 = vmatprep.subr.mxu0 0.0
    %1069 = vmatpush1.msra.mxu0 0.0
    %1070 = vmatprep.subr.mxu0 0.0
    %1071 = vmatpush1.msra.mxu0 0.0
    %1072 = vmatprep.subr.mxu0 0.0
    %1073 = vmatpush1.msra.mxu0 0.0
    %1074 = vmatprep.subr.mxu0 0.0
    %1075 = vmatpush1.msra.mxu0 0.0
    %1076 = vmatprep.subr.mxu0 0.0
    %1077 = vmatpush1.msra.mxu0 0.0
    %1078 = vmatprep.subr.mxu0 0.0
    %1079 = vmatpush1.msra.mxu0 0.0
    %1080 = vmatprep.subr.mxu0 0.0
    %1081 = vmatpush1.msra.mxu0 0.0
    %1082 = vmatprep.subr.mxu0 0.0
    %1083 = vmatpush1.msra.mxu0 0.0
    %1084 = vmatprep.subr.mxu0 0.0
    %1085 = vmatpush1.msra.mxu0 0.0
    %1086 = vmatprep.subr.mxu0 0.0
    %1087 = vmatpush1.msra.mxu0 0.0
    %1088 = vmatprep.subr.mxu0 0.0
    %1089 = vmatpush1.msra.mxu0 0.0
    %1090 = vmatprep.subr.mxu0 0.0
    %1091 = vmatpush1.msra.mxu0 0.0
    %1092 = vmatprep.subr.mxu0 0.0
    %1093 = vmatpush1.msra.mxu0 0.0
    %1094 = vmatprep.subr.mxu0 0.0
    %1095 = vmatpush1.msra.mxu0 0.0
    %1096 = vmatprep.subr.mxu0 0.0
    %1097 = vmatpush1.msra.mxu0 0.0
    %1098 = vmatprep.subr.mxu0 0.0
    %1099 = vmatpush1.msra.mxu0 0.0
    %1100 = vmatprep.subr.mxu0 0.0
    %1101 = vmatpush1.msra.mxu0 0.0
    %1102 = vmatprep.mubr.f32.mxu0 0.0
    %1103 = vmatmul.mubr.f32.gmra.mrb[0].mxu0 %v1036
    %v1104 = vpop.f32.mrb[0].mxu0
    %v1105 = vadd.f32 %v362, %v1104
    %v1106 = vpop.f32.mrb[0].mxu0
    %1107 = vdwg.mxu0
    %v1109 = vsel %vm201, %v957, 0
    %1111 = vmatprep.subr.mxu0 0.0
    %1112 = vmatpush1.msra.mxu0 %v188
    %1113 = vmatprep.subr.mxu0 0.0
    %1114 = vmatpush1.msra.mxu0 %v189
    %1115 = vmatprep.subr.mxu0 0.0
    %1116 = vmatpush1.msra.mxu0 %v190
    %1117 = vmatprep.subr.mxu0 0.0
    %1118 = vmatpush1.msra.mxu0 %v191
    %1119 = vmatprep.subr.mxu0 0.0
    %1120 = vmatpush1.msra.mxu0 0.0
    %1121 = vmatprep.subr.mxu0 0.0
    %1122 = vmatpush1.msra.mxu0 0.0
    %1123 = vmatprep.subr.mxu0 0.0
    %1124 = vmatpush1.msra.mxu0 0.0
    %1125 = vmatprep.subr.mxu0 0.0
    %1126 = vmatpush1.msra.mxu0 0.0
    %1127 = vmatprep.subr.mxu0 0.0
    %1128 = vmatpush1.msra.mxu0 0.0
    %1129 = vmatprep.subr.mxu0 0.0
    %1130 = vmatpush1.msra.mxu0 0.0
    %1131 = vmatprep.subr.mxu0 0.0
    %1132 = vmatpush1.msra.mxu0 0.0
    %1133 = vmatprep.subr.mxu0 0.0
    %1134 = vmatpush1.msra.mxu0 0.0
    %1135 = vmatprep.subr.mxu0 0.0
    %1136 = vmatpush1.msra.mxu0 0.0
    %1137 = vmatprep.subr.mxu0 0.0
    %1138 = vmatpush1.msra.mxu0 0.0
    %1139 = vmatprep.subr.mxu0 0.0
    %1140 = vmatpush1.msra.mxu0 0.0
    %1141 = vmatprep.subr.mxu0 0.0
    %1142 = vmatpush1.msra.mxu0 0.0
    %1143 = vmatprep.subr.mxu0 0.0
    %1144 = vmatpush1.msra.mxu0 0.0
    %1145 = vmatprep.subr.mxu0 0.0
    %1146 = vmatpush1.msra.mxu0 0.0
    %1147 = vmatprep.subr.mxu0 0.0
    %1148 = vmatpush1.msra.mxu0 0.0
    %1149 = vmatprep.subr.mxu0 0.0
    %1150 = vmatpush1.msra.mxu0 0.0
    %1151 = vmatprep.subr.mxu0 0.0
    %1152 = vmatpush1.msra.mxu0 0.0
    %1153 = vmatprep.subr.mxu0 0.0
    %1154 = vmatpush1.msra.mxu0 0.0
    %1155 = vmatprep.subr.mxu0 0.0
    %1156 = vmatpush1.msra.mxu0 0.0
    %1157 = vmatprep.subr.mxu0 0.0
    %1158 = vmatpush1.msra.mxu0 0.0
    %1159 = vmatprep.subr.mxu0 0.0
    %1160 = vmatpush1.msra.mxu0 0.0
    %1161 = vmatprep.subr.mxu0 0.0
    %1162 = vmatpush1.msra.mxu0 0.0
    %1163 = vmatprep.subr.mxu0 0.0
    %1164 = vmatpush1.msra.mxu0 0.0
    %1165 = vmatprep.subr.mxu0 0.0
    %1166 = vmatpush1.msra.mxu0 0.0
    %1167 = vmatprep.subr.mxu0 0.0
    %1168 = vmatpush1.msra.mxu0 0.0
    %1169 = vmatprep.subr.mxu0 0.0
    %1170 = vmatpush1.msra.mxu0 0.0
    %1171 = vmatprep.subr.mxu0 0.0
    %1172 = vmatpush1.msra.mxu0 0.0
    %1173 = vmatprep.subr.mxu0 0.0
    %1174 = vmatpush1.msra.mxu0 0.0
    %1175 = vmatprep.mubr.f32.mxu0 0.0
    %1176 = vmatmul.mubr.f32.gmra.mrb[0].mxu0 %v1109
    %v1177 = vpop.f32.mrb[0].mxu0
    %v1178 = vadd.f32 0.0, %v1177
    %v1179 = vpop.f32.mrb[0].mxu0
    %1180 = vdwg.mxu0
    %v1181 = vadd.f32 %v1105, %v1178
    %v1182 = vtanh.pop %v1181
    %v1183 = vmax.f32 %v958, %v1182
    %1184 = vmatprep.subr.mxu0 0.0
    %1185 = vmatpush1.msra.mxu0 %v183
    %1186 = vmatprep.subr.mxu0 0.0
    %1187 = vmatpush1.msra.mxu0 %v184
    %1188 = vmatprep.subr.mxu0 0.0
    %1189 = vmatpush1.msra.mxu0 %v185
    %1190 = vmatprep.subr.mxu0 0.0
    %1191 = vmatpush1.msra.mxu0 %v186
    %1192 = vmatprep.subr.mxu0 0.0
    %1193 = vmatpush1.msra.mxu0 0.0
    %1194 = vmatprep.subr.mxu0 0.0
    %1195 = vmatpush1.msra.mxu0 0.0
    %1196 = vmatprep.subr.mxu0 0.0
    %1197 = vmatpush1.msra.mxu0 0.0
    %1198 = vmatprep.subr.mxu0 0.0
    %1199 = vmatpush1.msra.mxu0 0.0
    %1200 = vmatprep.subr.mxu0 0.0
    %1201 = vmatpush1.msra.mxu0 0.0
    %1202 = vmatprep.subr.mxu0 0.0
    %1203 = vmatpush1.msra.mxu0 0.0
    %1204 = vmatprep.subr.mxu0 0.0
    %1205 = vmatpush1.msra.mxu0 0.0
    %1206 = vmatprep.subr.mxu0 0.0
    %1207 = vmatpush1.msra.mxu0 0.0
    %1208 = vmatprep.subr.mxu0 0.0
    %1209 = vmatpush1.msra.mxu0 0.0
    %1210 = vmatprep.subr.mxu0 0.0
    %1211 = vmatpush1.msra.mxu0 0.0
    %1212 = vmatprep.subr.mxu0 0.0
    %1213 = vmatpush1.msra.mxu0 0.0
    %1214 = vmatprep.subr.mxu0 0.0
    %1215 = vmatpush1.msra.mxu0 0.0
    %1216 = vmatprep.subr.mxu0 0.0
    %1217 = vmatpush1.msra.mxu0 0.0
    %1218 = vmatprep.subr.mxu0 0.0
    %1219 = vmatpush1.msra.mxu0 0.0
    %1220 = vmatprep.subr.mxu0 0.0
    %1221 = vmatpush1.msra.mxu0 0.0
    %1222 = vmatprep.subr.mxu0 0.0
    %1223 = vmatpush1.msra.mxu0 0.0
    %1224 = vmatprep.subr.mxu0 0.0
    %1225 = vmatpush1.msra.mxu0 0.0
    %1226 = vmatprep.subr.mxu0 0.0
    %1227 = vmatpush1.msra.mxu0 0.0
    %1228 = vmatprep.subr.mxu0 0.0
    %1229 = vmatpush1.msra.mxu0 0.0
    %1230 = vmatprep.subr.mxu0 0.0
    %1231 = vmatpush1.msra.mxu0 0.0
    %1232 = vmatprep.subr.mxu0 0.0
    %1233 = vmatpush1.msra.mxu0 0.0
    %1234 = vmatprep.subr.mxu0 0.0
    %1235 = vmatpush1.msra.mxu0 0.0
    %1236 = vmatprep.subr.mxu0 0.0
    %1237 = vmatpush1.msra.mxu0 0.0
    %1238 = vmatprep.subr.mxu0 0.0
    %1239 = vmatpush1.msra.mxu0 0.0
    %1240 = vmatprep.subr.mxu0 0.0
    %1241 = vmatpush1.msra.mxu0 0.0
    %1242 = vmatprep.subr.mxu0 0.0
    %1243 = vmatpush1.msra.mxu0 0.0
    %1244 = vmatprep.subr.mxu0 0.0
    %1245 = vmatpush1.msra.mxu0 0.0
    %1246 = vmatprep.subr.mxu0 0.0
    %1247 = vmatpush1.msra.mxu0 0.0
    %1248 = vmatprep.mubr.f32.mxu0 0.0
    %1249 = vmatmul.mubr.f32.gmra.mrb[0].mxu0 %v1036
    %v1250 = vpop.f32.mrb[0].mxu0
    %v1251 = vadd.f32 0.0, %v1250
    %v1252 = vpop.f32.mrb[0].mxu0
    %1253 = vdwg.mxu0
    %v1254 = vadd.f32 %v280, %v1251
    %v1255 = vtanh.pop %v1254
    %v1257 = vsel %vm201, %v1255, 0
    %1259 = vmatprep.subr.mxu0 0.0
    %1260 = vmatpush1.msra.mxu0 %v179
    %1261 = vmatprep.subr.mxu0 0.0
    %1262 = vmatpush1.msra.mxu0 %v180
    %1263 = vmatprep.subr.mxu0 0.0
    %1264 = vmatpush1.msra.mxu0 %v181
    %1265 = vmatprep.subr.mxu0 0.0
    %1266 = vmatpush1.msra.mxu0 %v182
    %1267 = vmatprep.subr.mxu0 0.0
    %1268 = vmatpush1.msra.mxu0 0.0
    %1269 = vmatprep.subr.mxu0 0.0
    %1270 = vmatpush1.msra.mxu0 0.0
    %1271 = vmatprep.subr.mxu0 0.0
    %1272 = vmatpush1.msra.mxu0 0.0
    %1273 = vmatprep.subr.mxu0 0.0
    %1274 = vmatpush1.msra.mxu0 0.0
    %1275 = vmatprep.subr.mxu0 0.0
    %1276 = vmatpush1.msra.mxu0 0.0
    %1277 = vmatprep.subr.mxu0 0.0
    %1278 = vmatpush1.msra.mxu0 0.0
    %1279 = vmatprep.subr.mxu0 0.0
    %1280 = vmatpush1.msra.mxu0 0.0
    %1281 = vmatprep.subr.mxu0 0.0
    %1282 = vmatpush1.msra.mxu0 0.0
    %1283 = vmatprep.subr.mxu0 0.0
    %1284 = vmatpush1.msra.mxu0 0.0
    %1285 = vmatprep.subr.mxu0 0.0
    %1286 = vmatpush1.msra.mxu0 0.0
    %1287 = vmatprep.subr.mxu0 0.0
    %1288 = vmatpush1.msra.mxu0 0.0
    %1289 = vmatprep.subr.mxu0 0.0
    %1290 = vmatpush1.msra.mxu0 0.0
    %1291 = vmatprep.subr.mxu0 0.0
    %1292 = vmatpush1.msra.mxu0 0.0
    %1293 = vmatprep.subr.mxu0 0.0
    %1294 = vmatpush1.msra.mxu0 0.0
    %1295 = vmatprep.subr.mxu0 0.0
    %1296 = vmatpush1.msra.mxu0 0.0
    %1297 = vmatprep.subr.mxu0 0.0
    %1298 = vmatpush1.msra.mxu0 0.0
    %1299 = vmatprep.subr.mxu0 0.0
    %1300 = vmatpush1.msra.mxu0 0.0
    %1301 = vmatprep.subr.mxu0 0.0
    %1302 = vmatpush1.msra.mxu0 0.0
    %1303 = vmatprep.subr.mxu0 0.0
    %1304 = vmatpush1.msra.mxu0 0.0
    %1305 = vmatprep.subr.mxu0 0.0
    %1306 = vmatpush1.msra.mxu0 0.0
    %1307 = vmatprep.subr.mxu0 0.0
    %1308 = vmatpush1.msra.mxu0 0.0
    %1309 = vmatprep.subr.mxu0 0.0
    %1310 = vmatpush1.msra.mxu0 0.0
    %1311 = vmatprep.subr.mxu0 0.0
    %1312 = vmatpush1.msra.mxu0 0.0
    %1313 = vmatprep.subr.mxu0 0.0
    %1314 = vmatpush1.msra.mxu0 0.0
    %1315 = vmatprep.subr.mxu0 0.0
    %1316 = vmatpush1.msra.mxu0 0.0
    %1317 = vmatprep.subr.mxu0 0.0
    %1318 = vmatpush1.msra.mxu0 0.0
    %1319 = vmatprep.subr.mxu0 0.0
    %1320 = vmatpush1.msra.mxu0 0.0
    %1321 = vmatprep.subr.mxu0 0.0
    %1322 = vmatpush1.msra.mxu0 0.0
    %1323 = vmatprep.mubr.f32.mxu0 0.0
    %1324 = vmatmul.mubr.f32.gmra.mrb[0].mxu0 %v1257
    %v1325 = vpop.f32.mrb[0].mxu0
    %v1326 = vadd.f32 %v362, %v1325
    %v1327 = vpop.f32.mrb[0].mxu0
    %1328 = vdwg.mxu0
    %v1330 = vsel %vm201, %v1182, 0
    %1332 = vmatprep.subr.mxu0 0.0
    %1333 = vmatpush1.msra.mxu0 %v188
    %1334 = vmatprep.subr.mxu0 0.0
    %1335 = vmatpush1.msra.mxu0 %v189
    %1336 = vmatprep.subr.mxu0 0.0
    %1337 = vmatpush1.msra.mxu0 %v190
    %1338 = vmatprep.subr.mxu0 0.0
    %1339 = vmatpush1.msra.mxu0 %v191
    %1340 = vmatprep.subr.mxu0 0.0
    %1341 = vmatpush1.msra.mxu0 0.0
    %1342 = vmatprep.subr.mxu0 0.0
    %1343 = vmatpush1.msra.mxu0 0.0
    %1344 = vmatprep.subr.mxu0 0.0
    %1345 = vmatpush1.msra.mxu0 0.0
    %1346 = vmatprep.subr.mxu0 0.0
    %1347 = vmatpush1.msra.mxu0 0.0
    %1348 = vmatprep.subr.mxu0 0.0
    %1349 = vmatpush1.msra.mxu0 0.0
    %1350 = vmatprep.subr.mxu0 0.0
    %1351 = vmatpush1.msra.mxu0 0.0
    %1352 = vmatprep.subr.mxu0 0.0
    %1353 = vmatpush1.msra.mxu0 0.0
    %1354 = vmatprep.subr.mxu0 0.0
    %1355 = vmatpush1.msra.mxu0 0.0
    %1356 = vmatprep.subr.mxu0 0.0
    %1357 = vmatpush1.msra.mxu0 0.0
    %1358 = vmatprep.subr.mxu0 0.0
    %1359 = vmatpush1.msra.mxu0 0.0
    %1360 = vmatprep.subr.mxu0 0.0
    %1361 = vmatpush1.msra.mxu0 0.0
    %1362 = vmatprep.subr.mxu0 0.0
    %1363 = vmatpush1.msra.mxu0 0.0
    %1364 = vmatprep.subr.mxu0 0.0
    %1365 = vmatpush1.msra.mxu0 0.0
    %1366 = vmatprep.subr.mxu0 0.0
    %1367 = vmatpush1.msra.mxu0 0.0
    %1368 = vmatprep.subr.mxu0 0.0
    %1369 = vmatpush1.msra.mxu0 0.0
    %1370 = vmatprep.subr.mxu0 0.0
    %1371 = vmatpush1.msra.mxu0 0.0
    %1372 = vmatprep.subr.mxu0 0.0
    %1373 = vmatpush1.msra.mxu0 0.0
    %1374 = vmatprep.subr.mxu0 0.0
    %1375 = vmatpush1.msra.mxu0 0.0
    %1376 = vmatprep.subr.mxu0 0.0
    %1377 = vmatpush1.msra.mxu0 0.0
    %1378 = vmatprep.subr.mxu0 0.0
    %1379 = vmatpush1.msra.mxu0 0.0
    %1380 = vmatprep.subr.mxu0 0.0
    %1381 = vmatpush1.msra.mxu0 0.0
    %1382 = vmatprep.subr.mxu0 0.0
    %1383 = vmatpush1.msra.mxu0 0.0
    %1384 = vmatprep.subr.mxu0 0.0
    %1385 = vmatpush1.msra.mxu0 0.0
    %1386 = vmatprep.subr.mxu0 0.0
    %1387 = vmatpush1.msra.mxu0 0.0
    %1388 = vmatprep.subr.mxu0 0.0
    %1389 = vmatpush1.msra.mxu0 0.0
    %1390 = vmatprep.subr.mxu0 0.0
    %1391 = vmatpush1.msra.mxu0 0.0
    %1392 = vmatprep.subr.mxu0 0.0
    %1393 = vmatpush1.msra.mxu0 0.0
    %1394 = vmatprep.subr.mxu0 0.0
    %1395 = vmatpush1.msra.mxu0 0.0
    %1396 = vmatprep.mubr.f32.mxu0 0.0
    %1397 = vmatmul.mubr.f32.gmra.mrb[0].mxu0 %v1330
    %v1398 = vpop.f32.mrb[0].mxu0
    %v1399 = vadd.f32 0.0, %v1398
    %v1400 = vpop.f32.mrb[0].mxu0
    %1401 = vdwg.mxu0
    %v1402 = vadd.f32 %v1326, %v1399
    %v1403 = vtanh.pop %v1402
    %v1404 = vmax.f32 %v1183, %v1403
    %1405 = vmatprep.subr.mxu0 0.0
    %1406 = vmatpush1.msra.mxu0 %v183
    %1407 = vmatprep.subr.mxu0 0.0
    %1408 = vmatpush1.msra.mxu0 %v184
    %1409 = vmatprep.subr.mxu0 0.0
    %1410 = vmatpush1.msra.mxu0 %v185
    %1411 = vmatprep.subr.mxu0 0.0
    %1412 = vmatpush1.msra.mxu0 %v186
    %1413 = vmatprep.subr.mxu0 0.0
    %1414 = vmatpush1.msra.mxu0 0.0
    %1415 = vmatprep.subr.mxu0 0.0
    %1416 = vmatpush1.msra.mxu0 0.0
    %1417 = vmatprep.subr.mxu0 0.0
    %1418 = vmatpush1.msra.mxu0 0.0
    %1419 = vmatprep.subr.mxu0 0.0
    %1420 = vmatpush1.msra.mxu0 0.0
    %1421 = vmatprep.subr.mxu0 0.0
    %1422 = vmatpush1.msra.mxu0 0.0
    %1423 = vmatprep.subr.mxu0 0.0
    %1424 = vmatpush1.msra.mxu0 0.0
    %1425 = vmatprep.subr.mxu0 0.0
    %1426 = vmatpush1.msra.mxu0 0.0
    %1427 = vmatprep.subr.mxu0 0.0
    %1428 = vmatpush1.msra.mxu0 0.0
    %1429 = vmatprep.subr.mxu0 0.0
    %1430 = vmatpush1.msra.mxu0 0.0
    %1431 = vmatprep.subr.mxu0 0.0
    %1432 = vmatpush1.msra.mxu0 0.0
    %1433 = vmatprep.subr.mxu0 0.0
    %1434 = vmatpush1.msra.mxu0 0.0
    %1435 = vmatprep.subr.mxu0 0.0
    %1436 = vmatpush1.msra.mxu0 0.0
    %1437 = vmatprep.subr.mxu0 0.0
    %1438 = vmatpush1.msra.mxu0 0.0
    %1439 = vmatprep.subr.mxu0 0.0
    %1440 = vmatpush1.msra.mxu0 0.0
    %1441 = vmatprep.subr.mxu0 0.0
    %1442 = vmatpush1.msra.mxu0 0.0
    %1443 = vmatprep.subr.mxu0 0.0
    %1444 = vmatpush1.msra.mxu0 0.0
    %1445 = vmatprep.subr.mxu0 0.0
    %1446 = vmatpush1.msra.mxu0 0.0
    %1447 = vmatprep.subr.mxu0 0.0
    %1448 = vmatpush1.msra.mxu0 0.0
    %1449 = vmatprep.subr.mxu0 0.0
    %1450 = vmatpush1.msra.mxu0 0.0
    %1451 = vmatprep.subr.mxu0 0.0
    %1452 = vmatpush1.msra.mxu0 0.0
    %1453 = vmatprep.subr.mxu0 0.0
    %1454 = vmatpush1.msra.mxu0 0.0
    %1455 = vmatprep.subr.mxu0 0.0
    %1456 = vmatpush1.msra.mxu0 0.0
    %1457 = vmatprep.subr.mxu0 0.0
    %1458 = vmatpush1.msra.mxu0 0.0
    %1459 = vmatprep.subr.mxu0 0.0
    %1460 = vmatpush1.msra.mxu0 0.0
    %1461 = vmatprep.subr.mxu0 0.0
    %1462 = vmatpush1.msra.mxu0 0.0
    %1463 = vmatprep.subr.mxu0 0.0
    %1464 = vmatpush1.msra.mxu0 0.0
    %1465 = vmatprep.subr.mxu0 0.0
    %1466 = vmatpush1.msra.mxu0 0.0
    %1467 = vmatprep.subr.mxu0 0.0
    %1468 = vmatpush1.msra.mxu0 0.0
    %1469 = vmatprep.mubr.f32.mxu0 0.0
    %1470 = vmatmul.mubr.f32.gmra.mrb[0].mxu0 %v1257
    %v1471 = vpop.f32.mrb[0].mxu0
    %v1472 = vadd.f32 0.0, %v1471
    %v1473 = vpop.f32.mrb[0].mxu0
    %1474 = vdwg.mxu0
    %v1476 = vrot.slane %v1472, 6
    %v1478 = vadd.f32 %v280, %v1476
    %v1479 = vtanh.pop %v1478
    %v1481 = vrot.slane %v1479, 2
    %v1482 = vsel %vm201, %v1481, 0
    %1484 = vmatprep.subr.mxu0 0.0
    %1485 = vmatpush1.msra.mxu0 %v179
    %1486 = vmatprep.subr.mxu0 0.0
    %1487 = vmatpush1.msra.mxu0 %v180
    %1488 = vmatprep.subr.mxu0 0.0
    %1489 = vmatpush1.msra.mxu0 %v181
    %1490 = vmatprep.subr.mxu0 0.0
    %1491 = vmatpush1.msra.mxu0 %v182
    %1492 = vmatprep.subr.mxu0 0.0
    %1493 = vmatpush1.msra.mxu0 0.0
    %1494 = vmatprep.subr.mxu0 0.0
    %1495 = vmatpush1.msra.mxu0 0.0
    %1496 = vmatprep.subr.mxu0 0.0
    %1497 = vmatpush1.msra.mxu0 0.0
    %1498 = vmatprep.subr.mxu0 0.0
    %1499 = vmatpush1.msra.mxu0 0.0
    %1500 = vmatprep.subr.mxu0 0.0
    %1501 = vmatpush1.msra.mxu0 0.0
    %1502 = vmatprep.subr.mxu0 0.0
    %1503 = vmatpush1.msra.mxu0 0.0
    %1504 = vmatprep.subr.mxu0 0.0
    %1505 = vmatpush1.msra.mxu0 0.0
    %1506 = vmatprep.subr.mxu0 0.0
    %1507 = vmatpush1.msra.mxu0 0.0
    %1508 = vmatprep.subr.mxu0 0.0
    %1509 = vmatpush1.msra.mxu0 0.0
    %1510 = vmatprep.subr.mxu0 0.0
    %1511 = vmatpush1.msra.mxu0 0.0
    %1512 = vmatprep.subr.mxu0 0.0
    %1513 = vmatpush1.msra.mxu0 0.0
    %1514 = vmatprep.subr.mxu0 0.0
    %1515 = vmatpush1.msra.mxu0 0.0
    %1516 = vmatprep.subr.mxu0 0.0
    %1517 = vmatpush1.msra.mxu0 0.0
    %1518 = vmatprep.subr.mxu0 0.0
    %1519 = vmatpush1.msra.mxu0 0.0
    %1520 = vmatprep.subr.mxu0 0.0
    %1521 = vmatpush1.msra.mxu0 0.0
    %1522 = vmatprep.subr.mxu0 0.0
    %1523 = vmatpush1.msra.mxu0 0.0
    %1524 = vmatprep.subr.mxu0 0.0
    %1525 = vmatpush1.msra.mxu0 0.0
    %1526 = vmatprep.subr.mxu0 0.0
    %1527 = vmatpush1.msra.mxu0 0.0
    %1528 = vmatprep.subr.mxu0 0.0
    %1529 = vmatpush1.msra.mxu0 0.0
    %1530 = vmatprep.subr.mxu0 0.0
    %1531 = vmatpush1.msra.mxu0 0.0
    %1532 = vmatprep.subr.mxu0 0.0
    %1533 = vmatpush1.msra.mxu0 0.0
    %1534 = vmatprep.subr.mxu0 0.0
    %1535 = vmatpush1.msra.mxu0 0.0
    %1536 = vmatprep.subr.mxu0 0.0
    %1537 = vmatpush1.msra.mxu0 0.0
    %1538 = vmatprep.subr.mxu0 0.0
    %1539 = vmatpush1.msra.mxu0 0.0
    %1540 = vmatprep.subr.mxu0 0.0
    %1541 = vmatpush1.msra.mxu0 0.0
    %1542 = vmatprep.subr.mxu0 0.0
    %1543 = vmatpush1.msra.mxu0 0.0
    %1544 = vmatprep.subr.mxu0 0.0
    %1545 = vmatpush1.msra.mxu0 0.0
    %1546 = vmatprep.subr.mxu0 0.0
    %1547 = vmatpush1.msra.mxu0 0.0
    %1548 = vmatprep.mubr.f32.mxu0 0.0
    %1549 = vmatmul.mubr.f32.gmra.mrb[0].mxu0 %v1482
    %v1550 = vpop.f32.mrb[0].mxu0
    %v1551 = vadd.f32 %v362, %v1550
    %v1552 = vpop.f32.mrb[0].mxu0
    %1553 = vdwg.mxu0
    %v1555 = vsel %vm201, %v1403, 0
    %1557 = vmatprep.subr.mxu0 0.0
    %1558 = vmatpush1.msra.mxu0 %v188
    %1559 = vmatprep.subr.mxu0 0.0
    %1560 = vmatpush1.msra.mxu0 %v189
    %1561 = vmatprep.subr.mxu0 0.0
    %1562 = vmatpush1.msra.mxu0 %v190
    %1563 = vmatprep.subr.mxu0 0.0
    %1564 = vmatpush1.msra.mxu0 %v191
    %1565 = vmatprep.subr.mxu0 0.0
    %1566 = vmatpush1.msra.mxu0 0.0
    %1567 = vmatprep.subr.mxu0 0.0
    %1568 = vmatpush1.msra.mxu0 0.0
    %1569 = vmatprep.subr.mxu0 0.0
    %1570 = vmatpush1.msra.mxu0 0.0
    %1571 = vmatprep.subr.mxu0 0.0
    %1572 = vmatpush1.msra.mxu0 0.0
    %1573 = vmatprep.subr.mxu0 0.0
    %1574 = vmatpush1.msra.mxu0 0.0
    %1575 = vmatprep.subr.mxu0 0.0
    %1576 = vmatpush1.msra.mxu0 0.0
    %1577 = vmatprep.subr.mxu0 0.0
    %1578 = vmatpush1.msra.mxu0 0.0
    %1579 = vmatprep.subr.mxu0 0.0
    %1580 = vmatpush1.msra.mxu0 0.0
    %1581 = vmatprep.subr.mxu0 0.0
    %1582 = vmatpush1.msra.mxu0 0.0
    %1583 = vmatprep.subr.mxu0 0.0
    %1584 = vmatpush1.msra.mxu0 0.0
    %1585 = vmatprep.subr.mxu0 0.0
    %1586 = vmatpush1.msra.mxu0 0.0
    %1587 = vmatprep.subr.mxu0 0.0
    %1588 = vmatpush1.msra.mxu0 0.0
    %1589 = vmatprep.subr.mxu0 0.0
    %1590 = vmatpush1.msra.mxu0 0.0
    %1591 = vmatprep.subr.mxu0 0.0
    %1592 = vmatpush1.msra.mxu0 0.0
    %1593 = vmatprep.subr.mxu0 0.0
    %1594 = vmatpush1.msra.mxu0 0.0
    %1595 = vmatprep.subr.mxu0 0.0
    %1596 = vmatpush1.msra.mxu0 0.0
    %1597 = vmatprep.subr.mxu0 0.0
    %1598 = vmatpush1.msra.mxu0 0.0
    %1599 = vmatprep.subr.mxu0 0.0
    %1600 = vmatpush1.msra.mxu0 0.0
    %1601 = vmatprep.subr.mxu0 0.0
    %1602 = vmatpush1.msra.mxu0 0.0
    %1603 = vmatprep.subr.mxu0 0.0
    %1604 = vmatpush1.msra.mxu0 0.0
    %1605 = vmatprep.subr.mxu0 0.0
    %1606 = vmatpush1.msra.mxu0 0.0
    %1607 = vmatprep.subr.mxu0 0.0
    %1608 = vmatpush1.msra.mxu0 0.0
    %1609 = vmatprep.subr.mxu0 0.0
    %1610 = vmatpush1.msra.mxu0 0.0
    %1611 = vmatprep.subr.mxu0 0.0
    %1612 = vmatpush1.msra.mxu0 0.0
    %1613 = vmatprep.subr.mxu0 0.0
    %1614 = vmatpush1.msra.mxu0 0.0
    %1615 = vmatprep.subr.mxu0 0.0
    %1616 = vmatpush1.msra.mxu0 0.0
    %1617 = vmatprep.subr.mxu0 0.0
    %1618 = vmatpush1.msra.mxu0 0.0
    %1619 = vmatprep.subr.mxu0 0.0
    %1620 = vmatpush1.msra.mxu0 0.0
    %1621 = vmatprep.mubr.f32.mxu0 0.0
    %1622 = vmatmul.mubr.f32.gmra.mrb[0].mxu0 %v1555
    %v1623 = vpop.f32.mrb[0].mxu0
    %v1624 = vadd.f32 0.0, %v1623
    %v1625 = vpop.f32.mrb[0].mxu0
    %1626 = vdwg.mxu0
    %v1627 = vadd.f32 %v1551, %v1624
    %v1628 = vtanh.pop %v1627
    %v1629 = vmax.f32 %v1404, %v1628
    %1630 = vmatprep.subr.mxu0 0.0
    %1631 = vmatpush1.msra.mxu0 %v183
    %1632 = vmatprep.subr.mxu0 0.0
    %1633 = vmatpush1.msra.mxu0 %v184
    %1634 = vmatprep.subr.mxu0 0.0
    %1635 = vmatpush1.msra.mxu0 %v185
    %1636 = vmatprep.subr.mxu0 0.0
    %1637 = vmatpush1.msra.mxu0 %v186
    %1638 = vmatprep.subr.mxu0 0.0
    %1639 = vmatpush1.msra.mxu0 0.0
    %1640 = vmatprep.subr.mxu0 0.0
    %1641 = vmatpush1.msra.mxu0 0.0
    %1642 = vmatprep.subr.mxu0 0.0
    %1643 = vmatpush1.msra.mxu0 0.0
    %1644 = vmatprep.subr.mxu0 0.0
    %1645 = vmatpush1.msra.mxu0 0.0
    %1646 = vmatprep.subr.mxu0 0.0
    %1647 = vmatpush1.msra.mxu0 0.0
    %1648 = vmatprep.subr.mxu0 0.0
    %1649 = vmatpush1.msra.mxu0 0.0
    %1650 = vmatprep.subr.mxu0 0.0
    %1651 = vmatpush1.msra.mxu0 0.0
    %1652 = vmatprep.subr.mxu0 0.0
    %1653 = vmatpush1.msra.mxu0 0.0
    %1654 = vmatprep.subr.mxu0 0.0
    %1655 = vmatpush1.msra.mxu0 0.0
    %1656 = vmatprep.subr.mxu0 0.0
    %1657 = vmatpush1.msra.mxu0 0.0
    %1658 = vmatprep.subr.mxu0 0.0
    %1659 = vmatpush1.msra.mxu0 0.0
    %1660 = vmatprep.subr.mxu0 0.0
    %1661 = vmatpush1.msra.mxu0 0.0
    %1662 = vmatprep.subr.mxu0 0.0
    %1663 = vmatpush1.msra.mxu0 0.0
    %1664 = vmatprep.subr.mxu0 0.0
    %1665 = vmatpush1.msra.mxu0 0.0
    %1666 = vmatprep.subr.mxu0 0.0
    %1667 = vmatpush1.msra.mxu0 0.0
    %1668 = vmatprep.subr.mxu0 0.0
    %1669 = vmatpush1.msra.mxu0 0.0
    %1670 = vmatprep.subr.mxu0 0.0
    %1671 = vmatpush1.msra.mxu0 0.0
    %1672 = vmatprep.subr.mxu0 0.0
    %1673 = vmatpush1.msra.mxu0 0.0
    %1674 = vmatprep.subr.mxu0 0.0
    %1675 = vmatpush1.msra.mxu0 0.0
    %1676 = vmatprep.subr.mxu0 0.0
    %1677 = vmatpush1.msra.mxu0 0.0
    %1678 = vmatprep.subr.mxu0 0.0
    %1679 = vmatpush1.msra.mxu0 0.0
    %1680 = vmatprep.subr.mxu0 0.0
    %1681 = vmatpush1.msra.mxu0 0.0
    %1682 = vmatprep.subr.mxu0 0.0
    %1683 = vmatpush1.msra.mxu0 0.0
    %1684 = vmatprep.subr.mxu0 0.0
    %1685 = vmatpush1.msra.mxu0 0.0
    %1686 = vmatprep.subr.mxu0 0.0
    %1687 = vmatpush1.msra.mxu0 0.0
    %1688 = vmatprep.subr.mxu0 0.0
    %1689 = vmatpush1.msra.mxu0 0.0
    %1690 = vmatprep.subr.mxu0 0.0
    %1691 = vmatpush1.msra.mxu0 0.0
    %1692 = vmatprep.subr.mxu0 0.0
    %1693 = vmatpush1.msra.mxu0 0.0
    %1694 = vmatprep.mubr.f32.mxu0 0.0
    %1695 = vmatmul.mubr.f32.gmra.mrb[0].mxu0 %v1482
    %v1696 = vpop.f32.mrb[0].mxu0
    %v1697 = vadd.f32 0.0, %v1696
    %v1698 = vpop.f32.mrb[0].mxu0
    %1699 = vdwg.mxu0
    %v1701 = vrot.slane %v1697, 4
    %v1703 = vadd.f32 %v280, %v1701
    %v1704 = vtanh.pop %v1703
    %v1706 = vrot.slane %v1704, 4
    %v1707 = vsel %vm201, %v1706, 0
    %1709 = vmatprep.subr.mxu0 0.0
    %1710 = vmatpush1.msra.mxu0 %v179
    %1711 = vmatprep.subr.mxu0 0.0
    %1712 = vmatpush1.msra.mxu0 %v180
    %1713 = vmatprep.subr.mxu0 0.0
    %1714 = vmatpush1.msra.mxu0 %v181
    %1715 = vmatprep.subr.mxu0 0.0
    %1716 = vmatpush1.msra.mxu0 %v182
    %1717 = vmatprep.subr.mxu0 0.0
    %1718 = vmatpush1.msra.mxu0 0.0
    %1719 = vmatprep.subr.mxu0 0.0
    %1720 = vmatpush1.msra.mxu0 0.0
    %1721 = vmatprep.subr.mxu0 0.0
    %1722 = vmatpush1.msra.mxu0 0.0
    %1723 = vmatprep.subr.mxu0 0.0
    %1724 = vmatpush1.msra.mxu0 0.0
    %1725 = vmatprep.subr.mxu0 0.0
    %1726 = vmatpush1.msra.mxu0 0.0
    %1727 = vmatprep.subr.mxu0 0.0
    %1728 = vmatpush1.msra.mxu0 0.0
    %1729 = vmatprep.subr.mxu0 0.0
    %1730 = vmatpush1.msra.mxu0 0.0
    %1731 = vmatprep.subr.mxu0 0.0
    %1732 = vmatpush1.msra.mxu0 0.0
    %1733 = vmatprep.subr.mxu0 0.0
    %1734 = vmatpush1.msra.mxu0 0.0
    %1735 = vmatprep.subr.mxu0 0.0
    %1736 = vmatpush1.msra.mxu0 0.0
    %1737 = vmatprep.subr.mxu0 0.0
    %1738 = vmatpush1.msra.mxu0 0.0
    %1739 = vmatprep.subr.mxu0 0.0
    %1740 = vmatpush1.msra.mxu0 0.0
    %1741 = vmatprep.subr.mxu0 0.0
    %1742 = vmatpush1.msra.mxu0 0.0
    %1743 = vmatprep.subr.mxu0 0.0
    %1744 = vmatpush1.msra.mxu0 0.0
    %1745 = vmatprep.subr.mxu0 0.0
    %1746 = vmatpush1.msra.mxu0 0.0
    %1747 = vmatprep.subr.mxu0 0.0
    %1748 = vmatpush1.msra.mxu0 0.0
    %1749 = vmatprep.subr.mxu0 0.0
    %1750 = vmatpush1.msra.mxu0 0.0
    %1751 = vmatprep.subr.mxu0 0.0
    %1752 = vmatpush1.msra.mxu0 0.0
    %1753 = vmatprep.subr.mxu0 0.0
    %1754 = vmatpush1.msra.mxu0 0.0
    %1755 = vmatprep.subr.mxu0 0.0
    %1756 = vmatpush1.msra.mxu0 0.0
    %1757 = vmatprep.subr.mxu0 0.0
    %1758 = vmatpush1.msra.mxu0 0.0
    %1759 = vmatprep.subr.mxu0 0.0
    %1760 = vmatpush1.msra.mxu0 0.0
    %1761 = vmatprep.subr.mxu0 0.0
    %1762 = vmatpush1.msra.mxu0 0.0
    %1763 = vmatprep.subr.mxu0 0.0
    %1764 = vmatpush1.msra.mxu0 0.0
    %1765 = vmatprep.subr.mxu0 0.0
    %1766 = vmatpush1.msra.mxu0 0.0
    %1767 = vmatprep.subr.mxu0 0.0
    %1768 = vmatpush1.msra.mxu0 0.0
    %1769 = vmatprep.subr.mxu0 0.0
    %1770 = vmatpush1.msra.mxu0 0.0
    %1771 = vmatprep.subr.mxu0 0.0
    %1772 = vmatpush1.msra.mxu0 0.0
    %1773 = vmatprep.mubr.f32.mxu0 0.0
    %1774 = vmatmul.mubr.f32.gmra.mrb[0].mxu0 %v1707
    %v1775 = vpop.f32.mrb[0].mxu0
    %v1776 = vadd.f32 %v362, %v1775
    %v1777 = vpop.f32.mrb[0].mxu0
    %1778 = vdwg.mxu0
    %v1780 = vsel %vm201, %v1628, 0
    %1782 = vmatprep.subr.mxu0 0.0
    %1783 = vmatpush1.msra.mxu0 %v188
    %1784 = vmatprep.subr.mxu0 0.0
    %1785 = vmatpush1.msra.mxu0 %v189
    %1786 = vmatprep.subr.mxu0 0.0
    %1787 = vmatpush1.msra.mxu0 %v190
    %1788 = vmatprep.subr.mxu0 0.0
    %1789 = vmatpush1.msra.mxu0 %v191
    %1790 = vmatprep.subr.mxu0 0.0
    %1791 = vmatpush1.msra.mxu0 0.0
    %1792 = vmatprep.subr.mxu0 0.0
    %1793 = vmatpush1.msra.mxu0 0.0
    %1794 = vmatprep.subr.mxu0 0.0
    %1795 = vmatpush1.msra.mxu0 0.0
    %1796 = vmatprep.subr.mxu0 0.0
    %1797 = vmatpush1.msra.mxu0 0.0
    %1798 = vmatprep.subr.mxu0 0.0
    %1799 = vmatpush1.msra.mxu0 0.0
    %1800 = vmatprep.subr.mxu0 0.0
    %1801 = vmatpush1.msra.mxu0 0.0
    %1802 = vmatprep.subr.mxu0 0.0
    %1803 = vmatpush1.msra.mxu0 0.0
    %1804 = vmatprep.subr.mxu0 0.0
    %1805 = vmatpush1.msra.mxu0 0.0
    %1806 = vmatprep.subr.mxu0 0.0
    %1807 = vmatpush1.msra.mxu0 0.0
    %1808 = vmatprep.subr.mxu0 0.0
    %1809 = vmatpush1.msra.mxu0 0.0
    %1810 = vmatprep.subr.mxu0 0.0
    %1811 = vmatpush1.msra.mxu0 0.0
    %1812 = vmatprep.subr.mxu0 0.0
    %1813 = vmatpush1.msra.mxu0 0.0
    %1814 = vmatprep.subr.mxu0 0.0
    %1815 = vmatpush1.msra.mxu0 0.0
    %1816 = vmatprep.subr.mxu0 0.0
    %1817 = vmatpush1.msra.mxu0 0.0
    %1818 = vmatprep.subr.mxu0 0.0
    %1819 = vmatpush1.msra.mxu0 0.0
    %1820 = vmatprep.subr.mxu0 0.0
    %1821 = vmatpush1.msra.mxu0 0.0
    %1822 = vmatprep.subr.mxu0 0.0
    %1823 = vmatpush1.msra.mxu0 0.0
    %1824 = vmatprep.subr.mxu0 0.0
    %1825 = vmatpush1.msra.mxu0 0.0
    %1826 = vmatprep.subr.mxu0 0.0
    %1827 = vmatpush1.msra.mxu0 0.0
    %1828 = vmatprep.subr.mxu0 0.0
    %1829 = vmatpush1.msra.mxu0 0.0
    %1830 = vmatprep.subr.mxu0 0.0
    %1831 = vmatpush1.msra.mxu0 0.0
    %1832 = vmatprep.subr.mxu0 0.0
    %1833 = vmatpush1.msra.mxu0 0.0
    %1834 = vmatprep.subr.mxu0 0.0
    %1835 = vmatpush1.msra.mxu0 0.0
    %1836 = vmatprep.subr.mxu0 0.0
    %1837 = vmatpush1.msra.mxu0 0.0
    %1838 = vmatprep.subr.mxu0 0.0
    %1839 = vmatpush1.msra.mxu0 0.0
    %1840 = vmatprep.subr.mxu0 0.0
    %1841 = vmatpush1.msra.mxu0 0.0
    %1842 = vmatprep.subr.mxu0 0.0
    %1843 = vmatpush1.msra.mxu0 0.0
    %1844 = vmatprep.subr.mxu0 0.0
    %1845 = vmatpush1.msra.mxu0 0.0
    %1846 = vmatprep.mubr.f32.mxu0 0.0
    %1847 = vmatmul.mubr.f32.gmra.mrb[0].mxu0 %v1780
    %v1848 = vpop.f32.mrb[0].mxu0
    %v1849 = vadd.f32 0.0, %v1848
    %v1850 = vpop.f32.mrb[0].mxu0
    %1851 = vdwg.mxu0
    %v1852 = vadd.f32 %v1776, %v1849
    %v1853 = vtanh.pop %v1852
    %v1854 = vmax.f32 %v1629, %v1853
    %1855 = vmatprep.subr.mxu0 0.0
    %1856 = vmatpush1.msra.mxu0 %v183
    %1857 = vmatprep.subr.mxu0 0.0
    %1858 = vmatpush1.msra.mxu0 %v184
    %1859 = vmatprep.subr.mxu0 0.0
    %1860 = vmatpush1.msra.mxu0 %v185
    %1861 = vmatprep.subr.mxu0 0.0
    %1862 = vmatpush1.msra.mxu0 %v186
    %1863 = vmatprep.subr.mxu0 0.0
    %1864 = vmatpush1.msra.mxu0 0.0
    %1865 = vmatprep.subr.mxu0 0.0
    %1866 = vmatpush1.msra.mxu0 0.0
    %1867 = vmatprep.subr.mxu0 0.0
    %1868 = vmatpush1.msra.mxu0 0.0
    %1869 = vmatprep.subr.mxu0 0.0
    %1870 = vmatpush1.msra.mxu0 0.0
    %1871 = vmatprep.subr.mxu0 0.0
    %1872 = vmatpush1.msra.mxu0 0.0
    %1873 = vmatprep.subr.mxu0 0.0
    %1874 = vmatpush1.msra.mxu0 0.0
    %1875 = vmatprep.subr.mxu0 0.0
    %1876 = vmatpush1.msra.mxu0 0.0
    %1877 = vmatprep.subr.mxu0 0.0
    %1878 = vmatpush1.msra.mxu0 0.0
    %1879 = vmatprep.subr.mxu0 0.0
    %1880 = vmatpush1.msra.mxu0 0.0
    %1881 = vmatprep.subr.mxu0 0.0
    %1882 = vmatpush1.msra.mxu0 0.0
    %1883 = vmatprep.subr.mxu0 0.0
    %1884 = vmatpush1.msra.mxu0 0.0
    %1885 = vmatprep.subr.mxu0 0.0
    %1886 = vmatpush1.msra.mxu0 0.0
    %1887 = vmatprep.subr.mxu0 0.0
    %1888 = vmatpush1.msra.mxu0 0.0
    %1889 = vmatprep.subr.mxu0 0.0
    %1890 = vmatpush1.msra.mxu0 0.0
    %1891 = vmatprep.subr.mxu0 0.0
    %1892 = vmatpush1.msra.mxu0 0.0
    %1893 = vmatprep.subr.mxu0 0.0
    %1894 = vmatpush1.msra.mxu0 0.0
    %1895 = vmatprep.subr.mxu0 0.0
    %1896 = vmatpush1.msra.mxu0 0.0
    %1897 = vmatprep.subr.mxu0 0.0
    %1898 = vmatpush1.msra.mxu0 0.0
    %1899 = vmatprep.subr.mxu0 0.0
    %1900 = vmatpush1.msra.mxu0 0.0
    %1901 = vmatprep.subr.mxu0 0.0
    %1902 = vmatpush1.msra.mxu0 0.0
    %1903 = vmatprep.subr.mxu0 0.0
    %1904 = vmatpush1.msra.mxu0 0.0
    %1905 = vmatprep.subr.mxu0 0.0
    %1906 = vmatpush1.msra.mxu0 0.0
    %1907 = vmatprep.subr.mxu0 0.0
    %1908 = vmatpush1.msra.mxu0 0.0
    %1909 = vmatprep.subr.mxu0 0.0
    %1910 = vmatpush1.msra.mxu0 0.0
    %1911 = vmatprep.subr.mxu0 0.0
    %1912 = vmatpush1.msra.mxu0 0.0
    %1913 = vmatprep.subr.mxu0 0.0
    %1914 = vmatpush1.msra.mxu0 0.0
    %1915 = vmatprep.subr.mxu0 0.0
    %1916 = vmatpush1.msra.mxu0 0.0
    %1917 = vmatprep.subr.mxu0 0.0
    %1918 = vmatpush1.msra.mxu0 0.0
    %1919 = vmatprep.mubr.f32.mxu0 0.0
    %1920 = vmatmul.mubr.f32.gmra.mrb[0].mxu0 %v1707
    %v1921 = vpop.f32.mrb[0].mxu0
    %v1922 = vadd.f32 0.0, %v1921
    %v1923 = vpop.f32.mrb[0].mxu0
    %1924 = vdwg.mxu0
    %v1926 = vrot.slane %v1922, 2
    %v1928 = vadd.f32 %v280, %v1926
    %v1929 = vtanh.pop %v1928
    %v1931 = vrot.slane %v1929, 6
    %v1932 = vsel %vm201, %v1931, 0
    %1934 = vmatprep.subr.mxu0 0.0
    %1935 = vmatpush1.msra.mxu0 %v179
    %1936 = vmatprep.subr.mxu0 0.0
    %1937 = vmatpush1.msra.mxu0 %v180
    %1938 = vmatprep.subr.mxu0 0.0
    %1939 = vmatpush1.msra.mxu0 %v181
    %1940 = vmatprep.subr.mxu0 0.0
    %1941 = vmatpush1.msra.mxu0 %v182
    %1942 = vmatprep.subr.mxu0 0.0
    %1943 = vmatpush1.msra.mxu0 0.0
    %1944 = vmatprep.subr.mxu0 0.0
    %1945 = vmatpush1.msra.mxu0 0.0
    %1946 = vmatprep.subr.mxu0 0.0
    %1947 = vmatpush1.msra.mxu0 0.0
    %1948 = vmatprep.subr.mxu0 0.0
    %1949 = vmatpush1.msra.mxu0 0.0
    %1950 = vmatprep.subr.mxu0 0.0
    %1951 = vmatpush1.msra.mxu0 0.0
    %1952 = vmatprep.subr.mxu0 0.0
    %1953 = vmatpush1.msra.mxu0 0.0
    %1954 = vmatprep.subr.mxu0 0.0
    %1955 = vmatpush1.msra.mxu0 0.0
    %1956 = vmatprep.subr.mxu0 0.0
    %1957 = vmatpush1.msra.mxu0 0.0
    %1958 = vmatprep.subr.mxu0 0.0
    %1959 = vmatpush1.msra.mxu0 0.0
    %1960 = vmatprep.subr.mxu0 0.0
    %1961 = vmatpush1.msra.mxu0 0.0
    %1962 = vmatprep.subr.mxu0 0.0
    %1963 = vmatpush1.msra.mxu0 0.0
    %1964 = vmatprep.subr.mxu0 0.0
    %1965 = vmatpush1.msra.mxu0 0.0
    %1966 = vmatprep.subr.mxu0 0.0
    %1967 = vmatpush1.msra.mxu0 0.0
    %1968 = vmatprep.subr.mxu0 0.0
    %1969 = vmatpush1.msra.mxu0 0.0
    %1970 = vmatprep.subr.mxu0 0.0
    %1971 = vmatpush1.msra.mxu0 0.0
    %1972 = vmatprep.subr.mxu0 0.0
    %1973 = vmatpush1.msra.mxu0 0.0
    %1974 = vmatprep.subr.mxu0 0.0
    %1975 = vmatpush1.msra.mxu0 0.0
    %1976 = vmatprep.subr.mxu0 0.0
    %1977 = vmatpush1.msra.mxu0 0.0
    %1978 = vmatprep.subr.mxu0 0.0
    %1979 = vmatpush1.msra.mxu0 0.0
    %1980 = vmatprep.subr.mxu0 0.0
    %1981 = vmatpush1.msra.mxu0 0.0
    %1982 = vmatprep.subr.mxu0 0.0
    %1983 = vmatpush1.msra.mxu0 0.0
    %1984 = vmatprep.subr.mxu0 0.0
    %1985 = vmatpush1.msra.mxu0 0.0
    %1986 = vmatprep.subr.mxu0 0.0
    %1987 = vmatpush1.msra.mxu0 0.0
    %1988 = vmatprep.subr.mxu0 0.0
    %1989 = vmatpush1.msra.mxu0 0.0
    %1990 = vmatprep.subr.mxu0 0.0
    %1991 = vmatpush1.msra.mxu0 0.0
    %1992 = vmatprep.subr.mxu0 0.0
    %1993 = vmatpush1.msra.mxu0 0.0
    %1994 = vmatprep.subr.mxu0 0.0
    %1995 = vmatpush1.msra.mxu0 0.0
    %1996 = vmatprep.subr.mxu0 0.0
    %1997 = vmatpush1.msra.mxu0 0.0
    %1998 = vmatprep.mubr.f32.mxu0 0.0
    %1999 = vmatmul.mubr.f32.gmra.mrb[0].mxu0 %v1932
    %v2000 = vpop.f32.mrb[0].mxu0
    %v2001 = vadd.f32 %v362, %v2000
    %v2002 = vpop.f32.mrb[0].mxu0
    %2003 = vdwg.mxu0
    %v2005 = vsel %vm201, %v1853, 0
    %2007 = vmatprep.subr.mxu0 0.0
    %2008 = vmatpush1.msra.mxu0 %v188
    %2009 = vmatprep.subr.mxu0 0.0
    %2010 = vmatpush1.msra.mxu0 %v189
    %2011 = vmatprep.subr.mxu0 0.0
    %2012 = vmatpush1.msra.mxu0 %v190
    %2013 = vmatprep.subr.mxu0 0.0
    %2014 = vmatpush1.msra.mxu0 %v191
    %2015 = vmatprep.subr.mxu0 0.0
    %2016 = vmatpush1.msra.mxu0 0.0
    %2017 = vmatprep.subr.mxu0 0.0
    %2018 = vmatpush1.msra.mxu0 0.0
    %2019 = vmatprep.subr.mxu0 0.0
    %2020 = vmatpush1.msra.mxu0 0.0
    %2021 = vmatprep.subr.mxu0 0.0
    %2022 = vmatpush1.msra.mxu0 0.0
    %2023 = vmatprep.subr.mxu0 0.0
    %2024 = vmatpush1.msra.mxu0 0.0
    %2025 = vmatprep.subr.mxu0 0.0
    %2026 = vmatpush1.msra.mxu0 0.0
    %2027 = vmatprep.subr.mxu0 0.0
    %2028 = vmatpush1.msra.mxu0 0.0
    %2029 = vmatprep.subr.mxu0 0.0
    %2030 = vmatpush1.msra.mxu0 0.0
    %2031 = vmatprep.subr.mxu0 0.0
    %2032 = vmatpush1.msra.mxu0 0.0
    %2033 = vmatprep.subr.mxu0 0.0
    %2034 = vmatpush1.msra.mxu0 0.0
    %2035 = vmatprep.subr.mxu0 0.0
    %2036 = vmatpush1.msra.mxu0 0.0
    %2037 = vmatprep.subr.mxu0 0.0
    %2038 = vmatpush1.msra.mxu0 0.0
    %2039 = vmatprep.subr.mxu0 0.0
    %2040 = vmatpush1.msra.mxu0 0.0
    %2041 = vmatprep.subr.mxu0 0.0
    %2042 = vmatpush1.msra.mxu0 0.0
    %2043 = vmatprep.subr.mxu0 0.0
    %2044 = vmatpush1.msra.mxu0 0.0
    %2045 = vmatprep.subr.mxu0 0.0
    %2046 = vmatpush1.msra.mxu0 0.0
    %2047 = vmatprep.subr.mxu0 0.0
    %2048 = vmatpush1.msra.mxu0 0.0
    %2049 = vmatprep.subr.mxu0 0.0
    %2050 = vmatpush1.msra.mxu0 0.0
    %2051 = vmatprep.subr.mxu0 0.0
    %2052 = vmatpush1.msra.mxu0 0.0
    %2053 = vmatprep.subr.mxu0 0.0
    %2054 = vmatpush1.msra.mxu0 0.0
    %2055 = vmatprep.subr.mxu0 0.0
    %2056 = vmatpush1.msra.mxu0 0.0
    %2057 = vmatprep.subr.mxu0 0.0
    %2058 = vmatpush1.msra.mxu0 0.0
    %2059 = vmatprep.subr.mxu0 0.0
    %2060 = vmatpush1.msra.mxu0 0.0
    %2061 = vmatprep.subr.mxu0 0.0
    %2062 = vmatpush1.msra.mxu0 0.0
    %2063 = vmatprep.subr.mxu0 0.0
    %2064 = vmatpush1.msra.mxu0 0.0
    %2065 = vmatprep.subr.mxu0 0.0
    %2066 = vmatpush1.msra.mxu0 0.0
    %2067 = vmatprep.subr.mxu0 0.0
    %2068 = vmatpush1.msra.mxu0 0.0
    %2069 = vmatprep.subr.mxu0 0.0
    %2070 = vmatpush1.msra.mxu0 0.0
    %2071 = vmatprep.mubr.f32.mxu0 0.0
    %2072 = vmatmul.mubr.f32.gmra.mrb[0].mxu0 %v2005
    %v2073 = vpop.f32.mrb[0].mxu0
    %v2074 = vadd.f32 0.0, %v2073
    %v2075 = vpop.f32.mrb[0].mxu0
    %2076 = vdwg.mxu0
    %v2077 = vadd.f32 %v2001, %v2074
    %v2078 = vtanh.pop %v2077
    %v2079 = vmax.f32 %v1854, %v2078
    %v2080 = vld [vmem:[%s5] sm:$0xff]
    %v2081 = vld [vmem:[%s5 + $0x8] sm:$0xff]
    %v2082 = vld [vmem:[%s5 + $0x10] sm:$0xff]
    %v2083 = vld [vmem:[%s5 + $0x18] sm:$0xff]
    %v2084 = vld [vmem:[%s6] sm:$0x1]
    %v2086 = vlaneseq
    %v2087 = vshrl.u32 %v2086, 7
    %v2088 = vsub.s32 0, %v2087
    %v2089 = vrot.slane %v2084, %v2088
    %v2092 = vsel %vm201, %v2079, 0
    %2094 = vmatprep.subr.mxu0 0.0
    %2095 = vmatpush1.msra.mxu0 %v2080
    %2096 = vmatprep.subr.mxu0 0.0
    %2097 = vmatpush1.msra.mxu0 %v2081
    %2098 = vmatprep.subr.mxu0 0.0
    %2099 = vmatpush1.msra.mxu0 %v2082
    %2100 = vmatprep.subr.mxu0 0.0
    %2101 = vmatpush1.msra.mxu0 %v2083
    %2102 = vmatprep.subr.mxu0 0.0
    %2103 = vmatpush1.msra.mxu0 0.0
    %2104 = vmatprep.subr.mxu0 0.0
    %2105 = vmatpush1.msra.mxu0 0.0
    %2106 = vmatprep.subr.mxu0 0.0
    %2107 = vmatpush1.msra.mxu0 0.0
    %2108 = vmatprep.subr.mxu0 0.0
    %2109 = vmatpush1.msra.mxu0 0.0
    %2110 = vmatprep.subr.mxu0 0.0
    %2111 = vmatpush1.msra.mxu0 0.0
    %2112 = vmatprep.subr.mxu0 0.0
    %2113 = vmatpush1.msra.mxu0 0.0
    %2114 = vmatprep.subr.mxu0 0.0
    %2115 = vmatpush1.msra.mxu0 0.0
    %2116 = vmatprep.subr.mxu0 0.0
    %2117 = vmatpush1.msra.mxu0 0.0
    %2118 = vmatprep.subr.mxu0 0.0
    %2119 = vmatpush1.msra.mxu0 0.0
    %2120 = vmatprep.subr.mxu0 0.0
    %2121 = vmatpush1.msra.mxu0 0.0
    %2122 = vmatprep.subr.mxu0 0.0
    %2123 = vmatpush1.msra.mxu0 0.0
    %2124 = vmatprep.subr.mxu0 0.0
    %2125 = vmatpush1.msra.mxu0 0.0
    %2126 = vmatprep.subr.mxu0 0.0
    %2127 = vmatpush1.msra.mxu0 0.0
    %2128 = vmatprep.subr.mxu0 0.0
    %2129 = vmatpush1.msra.mxu0 0.0
    %2130 = vmatprep.subr.mxu0 0.0
    %2131 = vmatpush1.msra.mxu0 0.0
    %2132 = vmatprep.subr.mxu0 0.0
    %2133 = vmatpush1.msra.mxu0 0.0
    %2134 = vmatprep.subr.mxu0 0.0
    %2135 = vmatpush1.msra.mxu0 0.0
    %2136 = vmatprep.subr.mxu0 0.0
    %2137 = vmatpush1.msra.mxu0 0.0
    %2138 = vmatprep.subr.mxu0 0.0
    %2139 = vmatpush1.msra.mxu0 0.0
    %2140 = vmatprep.subr.mxu0 0.0
    %2141 = vmatpush1.msra.mxu0 0.0
    %2142 = vmatprep.subr.mxu0 0.0
    %2143 = vmatpush1.msra.mxu0 0.0
    %2144 = vmatprep.subr.mxu0 0.0
    %2145 = vmatpush1.msra.mxu0 0.0
    %2146 = vmatprep.subr.mxu0 0.0
    %2147 = vmatpush1.msra.mxu0 0.0
    %2148 = vmatprep.subr.mxu0 0.0
    %2149 = vmatpush1.msra.mxu0 0.0
    %2150 = vmatprep.subr.mxu0 0.0
    %2151 = vmatpush1.msra.mxu0 0.0
    %2152 = vmatprep.subr.mxu0 0.0
    %2153 = vmatpush1.msra.mxu0 0.0
    %2154 = vmatprep.subr.mxu0 0.0
    %2155 = vmatpush1.msra.mxu0 0.0
    %2156 = vmatprep.subr.mxu0 0.0
    %2157 = vmatpush1.msra.mxu0 0.0
    %2158 = vmatprep.mubr.f32.mxu0 0.0
    %2159 = vmatmul.mubr.f32.gmra.mrb[0].mxu0 %v2092
    %v2160 = vpop.f32.mrb[0].mxu0
    %v2161 = vadd.f32 %v2089, %v2160
    %v2162 = vpop.f32.mrb[0].mxu0
    %2163 = vdwg.mxu0
    %2164 = vst [vmem:[#allocation8] sm:$0x3] %v2161
    // Predicated region
    $region42: #{tpu_custom_call.1} parent=1 // pred_check
      _
    $region43: #{tpu_custom_call.1} parent=1 // pred_check_branch
      %2166 = sbr.rel (0) target = $region45
    $region44: #{tpu_custom_call.1} parent=1 // pred_region
      %s2168 = ssub.s32 32, 32
      %2169 = vsyncadd [#allocation4], %s2168
      %s2171 = sshll.u32 [#allocation8], 4
      %s2172 = int_to_ptr.vmem [resolvable:$true] %s2171
      %2174 = dma.vmem_to_hbm [thread:$0]  %s2172, 32, %s7, [#allocation4]
    $region45: #{tpu_custom_call.1} parent=1 // pred_fallthru
      _
    // Predicated region
    $region46: #{tpu_custom_call.1} parent=1 // pred_check
      _
    $region47: #{tpu_custom_call.1} parent=1 // pred_check_branch
      %2176 = sbr.rel (0) target = $region49
    $region48: #{tpu_custom_call.1} parent=1 // pred_region
      %2177 = dma.done [#allocation4], 32
    $region49: #{tpu_custom_call.1} parent=1 // pred_fallthru
      _
    %2178 = vsyncpa [#allocation3], 1
    %2179 = vsyncpa [#allocation6], 1
    %2180 = vsyncpa [#allocation4], 1

</llo_original>
